<compile_context>
chip_gen: v7x
topology: tpu7x:2x2x1
jax: 0.10.0
libtpu: 0.0.40
codegen_flags: <defaults>
</compile_context>

<pallas_src>
import functools

import jax
import jax.numpy as jnp
from jax.experimental import pallas as pl
from jax.experimental.pallas import tpu as pltpu


# ----------------------------- Pallas kernel --------------------------------

def _sa_kernel(w_ref, x_ref, o_ref, *, ksize, H, W):
    # w_ref: SMEM (2*k*k,) f32      flattened (1, 2, k, k) conv weight
    # x_ref: VMEM (b_tile, C, H*W)  lane-dense batch tile
    # o_ref: VMEM (b_tile, C, H*W)
    p = ksize // 2
    HW = H * W
    b_tile = x_ref.shape[0]

    def shift_flat(v, off):
        # out[:, q] = v[:, q + off]; zero fill outside [0, HW).
        # Zero fill == the conv's zero padding for out-of-range rows.
        if off == 0:
            return v
        z = jnp.zeros((1, abs(off)), v.dtype)
        if off > 0:
            return jnp.concatenate([v[:, off:], z], axis=-1)
        return jnp.concatenate([z, v[:, :off]], axis=-1)

    # Column index of every flat (row-major) position; shared by all images.
    col = jax.lax.broadcasted_iota(jnp.int32, (1, HW), 1) % W

    for b in range(b_tile):                       # small static unroll
        xb = x_ref[b]                             # (C, HW), native dtype
        # Channel max in native dtype (bf16-friendly); mean accumulated in f32.
        mx = jnp.max(xb, axis=0, keepdims=True).astype(jnp.float32)    # (1,HW)
        avg = jnp.mean(xb.astype(jnp.float32), axis=0, keepdims=True)  # (1,HW)

        # Hoist the lane (dx) shifts and the column-boundary masks out of the
        # tap loop: k column-shifted, column-masked copies of each map.
        a_cols, m_cols = [], []
        for dx in range(ksize):
            oj = dx - p
            valid = (col >= -oj) & (col < W - oj)        # col + oj in [0, W)
            a_cols.append(jnp.where(valid, shift_flat(avg, oj), 0.0))
            m_cols.append(jnp.where(valid, shift_flat(mx, oj), 0.0))

        # k x k conv (2 -> 1 channels, no bias), fully unrolled at trace time:
        # accumulate all dx taps of one dy row, then one flat row shift per dy.
        acc = jnp.zeros((1, HW), jnp.float32)
        for dy in range(ksize):
            row = jnp.zeros((1, HW), jnp.float32)
            for dx in range(ksize):
                row = row + w_ref[dy * ksize + dx] * a_cols[dx]
                row = row + w_ref[ksize * ksize + dy * ksize + dx] * m_cols[dx]
            acc = acc + shift_flat(row, (dy - p) * W)

        # sigmoid(acc) = 0.5*(tanh(acc/2)+1): single EUP op, exact, no divide.
        att = 0.5 * (jnp.tanh(0.5 * acc) + 1.0)          # (1, HW) f32

        # Re-read x from VMEM for the multiply so x is not kept live (and
        # possibly spilled) across the 2*k*k tap loop.
        o_ref[b] = (x_ref[b] * att.astype(o_ref.dtype)).astype(o_ref.dtype)


# ------------------------------- wrapper -------------------------------------

def _pick_b_tile(n, img_bytes, budget=8 << 20):
    # Pack images per grid step to amortize per-step overhead, but keep >= 2
    # grid steps when N >= 2 (both v7x TensorCores get work) and keep the
    # double-buffered in+out blocks within a budget sized for v5e's 16 MiB
    # scoped-VMEM default.  Only divisors of N are used (no partial blocks).
    if n <= 1:
        return 1
    max_imgs = max(1, budget // max(4 * img_bytes, 1))
    best = 1
    for d in range(1, n + 1):
        if n % d == 0 and d <= max_imgs and n // d >= 2:
            best = d
    return best


def sa_forward(x_nchw, w, *, ksize=7, b_tile=None):
    """SA.forward: x (N, C, H, W), w (1, 2, k, k).  Returns att * x, NCHW."""
    assert ksize in (3, 7), "kernel size must be 3 or 7"
    N, C, H, W = x_nchw.shape
    p = ksize // 2
    assert H > p and W > p
    HW = H * W

    # Free reshape for contiguous NCHW: makes the last dim lane-dense (H*W).
    x_flat = x_nchw.reshape(N, C, HW)
    w_flat = jnp.reshape(w, (-1,)).astype(jnp.float32)        # (2*k*k,) -> SMEM

    if b_tile is None:
        b_tile = _pick_b_tile(N, C * HW * x_nchw.dtype.itemsize)
    assert N % b_tile == 0
    grid = (N // b_tile,)

    block_bytes = b_tile * C * HW * max(x_nchw.dtype.itemsize, 4)
    vmem_limit = int(min(max(8 * block_bytes, 16 << 20), 32 << 20))

    out_flat = pl.pallas_call(
        functools.partial(_sa_kernel, ksize=ksize, H=H, W=W),
        out_shape=jax.ShapeDtypeStruct((N, C, HW), x_nchw.dtype),
        grid=grid,
        in_specs=[
            pl.BlockSpec(memory_space=pltpu.MemorySpace.SMEM),      # conv taps
            pl.BlockSpec((b_tile, C, HW), lambda n: (n, 0, 0)),     # x
        ],
        out_specs=pl.BlockSpec((b_tile, C, HW), lambda n: (n, 0, 0)),
        compiler_params=pltpu.CompilerParams(
            dimension_semantics=("parallel",),
            vmem_limit_bytes=vmem_limit),
    )(w_flat, x_flat)

    return out_flat.reshape(N, C, H, W)


# ------------------------------ reference ------------------------------------

def sa_forward_ref(x, w, *, ksize=7):
    p = ksize // 2
    avg = jnp.mean(x, axis=1, keepdims=True)
    mx = jnp.max(x, axis=1, keepdims=True)
    cat = jnp.concatenate([avg, mx], axis=1)                 # (N, 2, H, W)
    conv = jax.lax.conv_general_dilated(
        cat, w, window_strides=(1, 1), padding=((p, p), (p, p)),
        dimension_numbers=("NCHW", "OIHW", "NCHW"))
    att = jax.nn.sigmoid(conv)
    return att * x


# --------------------------------- main ---------------------------------------

if __name__ == "__main__":
    key = jax.random.PRNGKey(0)
    k_x, k_w = jax.random.split(key)

    N, C, H, W = 2, 4, 16, 16
    ksize = 7
    x = jax.random.normal(k_x, (N, C, H, W), jnp.float32)
    # PyTorch Conv2d default init bound: 1/sqrt(fan_in), fan_in = 2 * k * k.
    bound = 1.0 / (2 * ksize * ksize) ** 0.5
    w = jax.random.uniform(k_w, (1, 2, ksize, ksize), jnp.float32, -bound, bound)

    out = jax.block_until_ready(sa_forward(x, w, ksize=ksize))

    ref = sa_forward_ref(x, w, ksize=ksize)
    err = float(jnp.max(jnp.abs(out - ref)))
    assert out.shape == (N, C, H, W)
    assert err < 1e-4, err
    print("KERNEL_OK")
</pallas_src>

<mosaic_0001>
module attributes {stable_mosaic.version = 11 : i64} {
  func.func @_sa_kernel(%arg0: i32, %arg1: memref<98xf32, #tpu.memory_space<smem>>, %arg2: memref<1x4x256xf32, #tpu.memory_space<vmem>>, %arg3: memref<1x4x256xf32, #tpu.memory_space<vmem>>) attributes {dimension_semantics = [#tpu.dimension_semantics<parallel>], iteration_bounds = array<i64: 2>, scalar_prefetch = 0 : i64, scratch_operands = 0 : i64, tpu.core_type = #tpu.core_type<tc>, window_params = [{transform_indices = @transform_0, window_bounds = array<i64: 98>}, {transform_indices = @transform_1, window_bounds = array<i64: 1, 4, 256>}, {transform_indices = @transform_2, window_bounds = array<i64: 1, 4, 256>}]} {
    %0 = tpu.iota {dimensions = array<i32: 1>} : vector<1x256xi32>
    %c16_i32 = arith.constant 16 : i32
    %c0_i32 = arith.constant 0 : i32
    %1 = arith.cmpi eq, %c16_i32, %c0_i32 : i32
    %c1_i32 = arith.constant 1 : i32
    %2 = arith.select %1, %c1_i32, %c16_i32 : i32
    %3 = vector.broadcast %2 : i32 to vector<1x256xi32>
    %4 = arith.remsi %0, %3 : vector<1x256xi32>
    %c0_i32_0 = arith.constant 0 : i32
    %5 = vector.broadcast %c0_i32_0 : i32 to vector<1x256xi32>
    %6 = arith.cmpi ne, %4, %5 : vector<1x256xi32>
    %c0_i32_1 = arith.constant 0 : i32
    %7 = vector.broadcast %c0_i32_1 : i32 to vector<1x256xi32>
    %8 = arith.cmpi slt, %4, %7 : vector<1x256xi32>
    %c0_i32_2 = arith.constant 0 : i32
    %9 = arith.cmpi slt, %2, %c0_i32_2 : i32
    %10 = vector.broadcast %9 : i1 to vector<1x256xi1>
    %11 = vector.broadcast %10 : vector<1x256xi1> to vector<1x256xi1>
    %12 = arith.xori %8, %11 : vector<1x256xi1>
    %13 = arith.andi %12, %6 : vector<1x256xi1>
    %14 = vector.broadcast %2 : i32 to vector<1x256xi32>
    %15 = arith.addi %4, %14 : vector<1x256xi32>
    %16 = arith.select %13, %15, %4 : vector<1x256xi1>, vector<1x256xi32>
    %c0 = arith.constant 0 : index
    %c0_3 = arith.constant 0 : index
    %c0_4 = arith.constant 0 : index
    %17 = vector.load %arg2[%c0, %c0_3, %c0_4] : memref<1x4x256xf32, #tpu.memory_space<vmem>>, vector<1x4x256xf32>
    %18 = vector.shape_cast %17 : vector<1x4x256xf32> to vector<4x256xf32>
    %cst = arith.constant dense<0xFF800000> : vector<256xf32>
    %19 = vector.multi_reduction <maximumf>, %18, %cst [0] : vector<4x256xf32> to vector<256xf32>
    %20 = vector.shape_cast %19 : vector<256xf32> to vector<1x256xf32>
    %cst_5 = arith.constant dense<0.000000e+00> : vector<256xf32>
    %21 = vector.multi_reduction <add>, %18, %cst_5 [0] : vector<4x256xf32> to vector<256xf32>
    %22 = vector.shape_cast %21 : vector<256xf32> to vector<1x256xf32>
    %cst_6 = arith.constant 4.000000e+00 : f32
    %23 = vector.broadcast %cst_6 : f32 to vector<1x256xf32>
    %24 = arith.divf %22, %23 : vector<1x256xf32>
    %c3_i32 = arith.constant 3 : i32
    %25 = vector.broadcast %c3_i32 : i32 to vector<1x256xi32>
    %26 = arith.cmpi sge, %16, %25 : vector<1x256xi32>
    %c19_i32 = arith.constant 19 : i32
    %27 = vector.broadcast %c19_i32 : i32 to vector<1x256xi32>
    %28 = arith.cmpi slt, %16, %27 : vector<1x256xi32>
    %29 = arith.andi %26, %28 : vector<1x256xi1>
    %cst_7 = arith.constant 0.000000e+00 : f32
    %30 = vector.broadcast %cst_7 : f32 to vector<1x3xf32>
    %31 = vector.extract_strided_slice %24 {offsets = [0, 0], sizes = [1, 253], strides = [1, 1]} : vector<1x256xf32> to vector<1x253xf32>
    %32 = tpu.concatenate %30, %31 in 1 : vector<1x3xf32>, vector<1x253xf32> -> vector<1x256xf32>
    %cst_8 = arith.constant 0.000000e+00 : f32
    %33 = vector.broadcast %cst_8 : f32 to vector<1x256xf32>
    %34 = arith.select %29, %32, %33 : vector<1x256xi1>, vector<1x256xf32>
    %cst_9 = arith.constant 0.000000e+00 : f32
    %35 = vector.broadcast %cst_9 : f32 to vector<1x3xf32>
    %36 = vector.extract_strided_slice %20 {offsets = [0, 0], sizes = [1, 253], strides = [1, 1]} : vector<1x256xf32> to vector<1x253xf32>
    %37 = tpu.concatenate %35, %36 in 1 : vector<1x3xf32>, vector<1x253xf32> -> vector<1x256xf32>
    %cst_10 = arith.constant 0.000000e+00 : f32
    %38 = vector.broadcast %cst_10 : f32 to vector<1x256xf32>
    %39 = arith.select %29, %37, %38 : vector<1x256xi1>, vector<1x256xf32>
    %c2_i32 = arith.constant 2 : i32
    %40 = vector.broadcast %c2_i32 : i32 to vector<1x256xi32>
    %41 = arith.cmpi sge, %16, %40 : vector<1x256xi32>
    %c18_i32 = arith.constant 18 : i32
    %42 = vector.broadcast %c18_i32 : i32 to vector<1x256xi32>
    %43 = arith.cmpi slt, %16, %42 : vector<1x256xi32>
    %44 = arith.andi %41, %43 : vector<1x256xi1>
    %cst_11 = arith.constant 0.000000e+00 : f32
    %45 = vector.broadcast %cst_11 : f32 to vector<1x2xf32>
    %46 = vector.extract_strided_slice %24 {offsets = [0, 0], sizes = [1, 254], strides = [1, 1]} : vector<1x256xf32> to vector<1x254xf32>
    %47 = tpu.concatenate %45, %46 in 1 : vector<1x2xf32>, vector<1x254xf32> -> vector<1x256xf32>
    %cst_12 = arith.constant 0.000000e+00 : f32
    %48 = vector.broadcast %cst_12 : f32 to vector<1x256xf32>
    %49 = arith.select %44, %47, %48 : vector<1x256xi1>, vector<1x256xf32>
    %cst_13 = arith.constant 0.000000e+00 : f32
    %50 = vector.broadcast %cst_13 : f32 to vector<1x2xf32>
    %51 = vector.extract_strided_slice %20 {offsets = [0, 0], sizes = [1, 254], strides = [1, 1]} : vector<1x256xf32> to vector<1x254xf32>
    %52 = tpu.concatenate %50, %51 in 1 : vector<1x2xf32>, vector<1x254xf32> -> vector<1x256xf32>
    %cst_14 = arith.constant 0.000000e+00 : f32
    %53 = vector.broadcast %cst_14 : f32 to vector<1x256xf32>
    %54 = arith.select %44, %52, %53 : vector<1x256xi1>, vector<1x256xf32>
    %c1_i32_15 = arith.constant 1 : i32
    %55 = vector.broadcast %c1_i32_15 : i32 to vector<1x256xi32>
    %56 = arith.cmpi sge, %16, %55 : vector<1x256xi32>
    %c17_i32 = arith.constant 17 : i32
    %57 = vector.broadcast %c17_i32 : i32 to vector<1x256xi32>
    %58 = arith.cmpi slt, %16, %57 : vector<1x256xi32>
    %59 = arith.andi %56, %58 : vector<1x256xi1>
    %cst_16 = arith.constant 0.000000e+00 : f32
    %60 = vector.broadcast %cst_16 : f32 to vector<1x1xf32>
    %61 = vector.extract_strided_slice %24 {offsets = [0, 0], sizes = [1, 255], strides = [1, 1]} : vector<1x256xf32> to vector<1x255xf32>
    %62 = tpu.concatenate %60, %61 in 1 : vector<1x1xf32>, vector<1x255xf32> -> vector<1x256xf32>
    %cst_17 = arith.constant 0.000000e+00 : f32
    %63 = vector.broadcast %cst_17 : f32 to vector<1x256xf32>
    %64 = arith.select %59, %62, %63 : vector<1x256xi1>, vector<1x256xf32>
    %cst_18 = arith.constant 0.000000e+00 : f32
    %65 = vector.broadcast %cst_18 : f32 to vector<1x1xf32>
    %66 = vector.extract_strided_slice %20 {offsets = [0, 0], sizes = [1, 255], strides = [1, 1]} : vector<1x256xf32> to vector<1x255xf32>
    %67 = tpu.concatenate %65, %66 in 1 : vector<1x1xf32>, vector<1x255xf32> -> vector<1x256xf32>
    %cst_19 = arith.constant 0.000000e+00 : f32
    %68 = vector.broadcast %cst_19 : f32 to vector<1x256xf32>
    %69 = arith.select %59, %67, %68 : vector<1x256xi1>, vector<1x256xf32>
    %c0_i32_20 = arith.constant 0 : i32
    %70 = vector.broadcast %c0_i32_20 : i32 to vector<1x256xi32>
    %71 = arith.cmpi sge, %16, %70 : vector<1x256xi32>
    %c16_i32_21 = arith.constant 16 : i32
    %72 = vector.broadcast %c16_i32_21 : i32 to vector<1x256xi32>
    %73 = arith.cmpi slt, %16, %72 : vector<1x256xi32>
    %74 = arith.andi %71, %73 : vector<1x256xi1>
    %cst_22 = arith.constant 0.000000e+00 : f32
    %75 = vector.broadcast %cst_22 : f32 to vector<1x256xf32>
    %76 = arith.select %74, %24, %75 : vector<1x256xi1>, vector<1x256xf32>
    %cst_23 = arith.constant 0.000000e+00 : f32
    %77 = vector.broadcast %cst_23 : f32 to vector<1x256xf32>
    %78 = arith.select %74, %20, %77 : vector<1x256xi1>, vector<1x256xf32>
    %c-1_i32 = arith.constant -1 : i32
    %79 = vector.broadcast %c-1_i32 : i32 to vector<1x256xi32>
    %80 = arith.cmpi sge, %16, %79 : vector<1x256xi32>
    %c15_i32 = arith.constant 15 : i32
    %81 = vector.broadcast %c15_i32 : i32 to vector<1x256xi32>
    %82 = arith.cmpi slt, %16, %81 : vector<1x256xi32>
    %83 = arith.andi %80, %82 : vector<1x256xi1>
    %cst_24 = arith.constant 0.000000e+00 : f32
    %84 = vector.broadcast %cst_24 : f32 to vector<1x1xf32>
    %85 = vector.extract_strided_slice %24 {offsets = [0, 1], sizes = [1, 255], strides = [1, 1]} : vector<1x256xf32> to vector<1x255xf32>
    %86 = tpu.concatenate %85, %84 in 1 : vector<1x255xf32>, vector<1x1xf32> -> vector<1x256xf32>
    %cst_25 = arith.constant 0.000000e+00 : f32
    %87 = vector.broadcast %cst_25 : f32 to vector<1x256xf32>
    %88 = arith.select %83, %86, %87 : vector<1x256xi1>, vector<1x256xf32>
    %cst_26 = arith.constant 0.000000e+00 : f32
    %89 = vector.broadcast %cst_26 : f32 to vector<1x1xf32>
    %90 = vector.extract_strided_slice %20 {offsets = [0, 1], sizes = [1, 255], strides = [1, 1]} : vector<1x256xf32> to vector<1x255xf32>
    %91 = tpu.concatenate %90, %89 in 1 : vector<1x255xf32>, vector<1x1xf32> -> vector<1x256xf32>
    %cst_27 = arith.constant 0.000000e+00 : f32
    %92 = vector.broadcast %cst_27 : f32 to vector<1x256xf32>
    %93 = arith.select %83, %91, %92 : vector<1x256xi1>, vector<1x256xf32>
    %c-2_i32 = arith.constant -2 : i32
    %94 = vector.broadcast %c-2_i32 : i32 to vector<1x256xi32>
    %95 = arith.cmpi sge, %16, %94 : vector<1x256xi32>
    %c14_i32 = arith.constant 14 : i32
    %96 = vector.broadcast %c14_i32 : i32 to vector<1x256xi32>
    %97 = arith.cmpi slt, %16, %96 : vector<1x256xi32>
    %98 = arith.andi %95, %97 : vector<1x256xi1>
    %cst_28 = arith.constant 0.000000e+00 : f32
    %99 = vector.broadcast %cst_28 : f32 to vector<1x2xf32>
    %100 = vector.extract_strided_slice %24 {offsets = [0, 2], sizes = [1, 254], strides = [1, 1]} : vector<1x256xf32> to vector<1x254xf32>
    %101 = tpu.concatenate %100, %99 in 1 : vector<1x254xf32>, vector<1x2xf32> -> vector<1x256xf32>
    %cst_29 = arith.constant 0.000000e+00 : f32
    %102 = vector.broadcast %cst_29 : f32 to vector<1x256xf32>
    %103 = arith.select %98, %101, %102 : vector<1x256xi1>, vector<1x256xf32>
    %cst_30 = arith.constant 0.000000e+00 : f32
    %104 = vector.broadcast %cst_30 : f32 to vector<1x2xf32>
    %105 = vector.extract_strided_slice %20 {offsets = [0, 2], sizes = [1, 254], strides = [1, 1]} : vector<1x256xf32> to vector<1x254xf32>
    %106 = tpu.concatenate %105, %104 in 1 : vector<1x254xf32>, vector<1x2xf32> -> vector<1x256xf32>
    %cst_31 = arith.constant 0.000000e+00 : f32
    %107 = vector.broadcast %cst_31 : f32 to vector<1x256xf32>
    %108 = arith.select %98, %106, %107 : vector<1x256xi1>, vector<1x256xf32>
    %c-3_i32 = arith.constant -3 : i32
    %109 = vector.broadcast %c-3_i32 : i32 to vector<1x256xi32>
    %110 = arith.cmpi sge, %16, %109 : vector<1x256xi32>
    %c13_i32 = arith.constant 13 : i32
    %111 = vector.broadcast %c13_i32 : i32 to vector<1x256xi32>
    %112 = arith.cmpi slt, %16, %111 : vector<1x256xi32>
    %113 = arith.andi %110, %112 : vector<1x256xi1>
    %cst_32 = arith.constant 0.000000e+00 : f32
    %114 = vector.broadcast %cst_32 : f32 to vector<1x3xf32>
    %115 = vector.extract_strided_slice %24 {offsets = [0, 3], sizes = [1, 253], strides = [1, 1]} : vector<1x256xf32> to vector<1x253xf32>
    %116 = tpu.concatenate %115, %114 in 1 : vector<1x253xf32>, vector<1x3xf32> -> vector<1x256xf32>
    %cst_33 = arith.constant 0.000000e+00 : f32
    %117 = vector.broadcast %cst_33 : f32 to vector<1x256xf32>
    %118 = arith.select %113, %116, %117 : vector<1x256xi1>, vector<1x256xf32>
    %cst_34 = arith.constant 0.000000e+00 : f32
    %119 = vector.broadcast %cst_34 : f32 to vector<1x3xf32>
    %120 = vector.extract_strided_slice %20 {offsets = [0, 3], sizes = [1, 253], strides = [1, 1]} : vector<1x256xf32> to vector<1x253xf32>
    %121 = tpu.concatenate %120, %119 in 1 : vector<1x253xf32>, vector<1x3xf32> -> vector<1x256xf32>
    %cst_35 = arith.constant 0.000000e+00 : f32
    %122 = vector.broadcast %cst_35 : f32 to vector<1x256xf32>
    %123 = arith.select %113, %121, %122 : vector<1x256xi1>, vector<1x256xf32>
    %cst_36 = arith.constant 0.000000e+00 : f32
    %124 = vector.broadcast %cst_36 : f32 to vector<1x256xf32>
    %cst_37 = arith.constant 0.000000e+00 : f32
    %125 = vector.broadcast %cst_37 : f32 to vector<1x256xf32>
    %c0_38 = arith.constant 0 : index
    %126 = memref.load %arg1[%c0_38] : memref<98xf32, #tpu.memory_space<smem>>
    %127 = vector.broadcast %126 : f32 to vector<1x256xf32>
    %128 = arith.mulf %127, %34 : vector<1x256xf32>
    %129 = arith.addf %125, %128 : vector<1x256xf32>
    %c49 = arith.constant 49 : index
    %130 = memref.load %arg1[%c49] : memref<98xf32, #tpu.memory_space<smem>>
    %131 = vector.broadcast %130 : f32 to vector<1x256xf32>
    %132 = arith.mulf %131, %39 : vector<1x256xf32>
    %133 = arith.addf %129, %132 : vector<1x256xf32>
    %c1 = arith.constant 1 : index
    %134 = memref.load %arg1[%c1] : memref<98xf32, #tpu.memory_space<smem>>
    %135 = vector.broadcast %134 : f32 to vector<1x256xf32>
    %136 = arith.mulf %135, %49 : vector<1x256xf32>
    %137 = arith.addf %133, %136 : vector<1x256xf32>
    %c50 = arith.constant 50 : index
    %138 = memref.load %arg1[%c50] : memref<98xf32, #tpu.memory_space<smem>>
    %139 = vector.broadcast %138 : f32 to vector<1x256xf32>
    %140 = arith.mulf %139, %54 : vector<1x256xf32>
    %141 = arith.addf %137, %140 : vector<1x256xf32>
    %c2 = arith.constant 2 : index
    %142 = memref.load %arg1[%c2] : memref<98xf32, #tpu.memory_space<smem>>
    %143 = vector.broadcast %142 : f32 to vector<1x256xf32>
    %144 = arith.mulf %143, %64 : vector<1x256xf32>
    %145 = arith.addf %141, %144 : vector<1x256xf32>
    %c51 = arith.constant 51 : index
    %146 = memref.load %arg1[%c51] : memref<98xf32, #tpu.memory_space<smem>>
    %147 = vector.broadcast %146 : f32 to vector<1x256xf32>
    %148 = arith.mulf %147, %69 : vector<1x256xf32>
    %149 = arith.addf %145, %148 : vector<1x256xf32>
    %c3 = arith.constant 3 : index
    %150 = memref.load %arg1[%c3] : memref<98xf32, #tpu.memory_space<smem>>
    %151 = vector.broadcast %150 : f32 to vector<1x256xf32>
    %152 = arith.mulf %151, %76 : vector<1x256xf32>
    %153 = arith.addf %149, %152 : vector<1x256xf32>
    %c52 = arith.constant 52 : index
    %154 = memref.load %arg1[%c52] : memref<98xf32, #tpu.memory_space<smem>>
    %155 = vector.broadcast %154 : f32 to vector<1x256xf32>
    %156 = arith.mulf %155, %78 : vector<1x256xf32>
    %157 = arith.addf %153, %156 : vector<1x256xf32>
    %c4 = arith.constant 4 : index
    %158 = memref.load %arg1[%c4] : memref<98xf32, #tpu.memory_space<smem>>
    %159 = vector.broadcast %158 : f32 to vector<1x256xf32>
    %160 = arith.mulf %159, %88 : vector<1x256xf32>
    %161 = arith.addf %157, %160 : vector<1x256xf32>
    %c53 = arith.constant 53 : index
    %162 = memref.load %arg1[%c53] : memref<98xf32, #tpu.memory_space<smem>>
    %163 = vector.broadcast %162 : f32 to vector<1x256xf32>
    %164 = arith.mulf %163, %93 : vector<1x256xf32>
    %165 = arith.addf %161, %164 : vector<1x256xf32>
    %c5 = arith.constant 5 : index
    %166 = memref.load %arg1[%c5] : memref<98xf32, #tpu.memory_space<smem>>
    %167 = vector.broadcast %166 : f32 to vector<1x256xf32>
    %168 = arith.mulf %167, %103 : vector<1x256xf32>
    %169 = arith.addf %165, %168 : vector<1x256xf32>
    %c54 = arith.constant 54 : index
    %170 = memref.load %arg1[%c54] : memref<98xf32, #tpu.memory_space<smem>>
    %171 = vector.broadcast %170 : f32 to vector<1x256xf32>
    %172 = arith.mulf %171, %108 : vector<1x256xf32>
    %173 = arith.addf %169, %172 : vector<1x256xf32>
    %c6 = arith.constant 6 : index
    %174 = memref.load %arg1[%c6] : memref<98xf32, #tpu.memory_space<smem>>
    %175 = vector.broadcast %174 : f32 to vector<1x256xf32>
    %176 = arith.mulf %175, %118 : vector<1x256xf32>
    %177 = arith.addf %173, %176 : vector<1x256xf32>
    %c55 = arith.constant 55 : index
    %178 = memref.load %arg1[%c55] : memref<98xf32, #tpu.memory_space<smem>>
    %179 = vector.broadcast %178 : f32 to vector<1x256xf32>
    %180 = arith.mulf %179, %123 : vector<1x256xf32>
    %181 = arith.addf %177, %180 : vector<1x256xf32>
    %cst_39 = arith.constant 0.000000e+00 : f32
    %182 = vector.broadcast %cst_39 : f32 to vector<1x48xf32>
    %183 = vector.extract_strided_slice %181 {offsets = [0, 0], sizes = [1, 208], strides = [1, 1]} : vector<1x256xf32> to vector<1x208xf32>
    %184 = tpu.concatenate %182, %183 in 1 : vector<1x48xf32>, vector<1x208xf32> -> vector<1x256xf32>
    %185 = arith.addf %124, %184 : vector<1x256xf32>
    %cst_40 = arith.constant 0.000000e+00 : f32
    %186 = vector.broadcast %cst_40 : f32 to vector<1x256xf32>
    %c7 = arith.constant 7 : index
    %187 = memref.load %arg1[%c7] : memref<98xf32, #tpu.memory_space<smem>>
    %188 = vector.broadcast %187 : f32 to vector<1x256xf32>
    %189 = arith.mulf %188, %34 : vector<1x256xf32>
    %190 = arith.addf %186, %189 : vector<1x256xf32>
    %c56 = arith.constant 56 : index
    %191 = memref.load %arg1[%c56] : memref<98xf32, #tpu.memory_space<smem>>
    %192 = vector.broadcast %191 : f32 to vector<1x256xf32>
    %193 = arith.mulf %192, %39 : vector<1x256xf32>
    %194 = arith.addf %190, %193 : vector<1x256xf32>
    %c8 = arith.constant 8 : index
    %195 = memref.load %arg1[%c8] : memref<98xf32, #tpu.memory_space<smem>>
    %196 = vector.broadcast %195 : f32 to vector<1x256xf32>
    %197 = arith.mulf %196, %49 : vector<1x256xf32>
    %198 = arith.addf %194, %197 : vector<1x256xf32>
    %c57 = arith.constant 57 : index
    %199 = memref.load %arg1[%c57] : memref<98xf32, #tpu.memory_space<smem>>
    %200 = vector.broadcast %199 : f32 to vector<1x256xf32>
    %201 = arith.mulf %200, %54 : vector<1x256xf32>
    %202 = arith.addf %198, %201 : vector<1x256xf32>
    %c9 = arith.constant 9 : index
    %203 = memref.load %arg1[%c9] : memref<98xf32, #tpu.memory_space<smem>>
    %204 = vector.broadcast %203 : f32 to vector<1x256xf32>
    %205 = arith.mulf %204, %64 : vector<1x256xf32>
    %206 = arith.addf %202, %205 : vector<1x256xf32>
    %c58 = arith.constant 58 : index
    %207 = memref.load %arg1[%c58] : memref<98xf32, #tpu.memory_space<smem>>
    %208 = vector.broadcast %207 : f32 to vector<1x256xf32>
    %209 = arith.mulf %208, %69 : vector<1x256xf32>
    %210 = arith.addf %206, %209 : vector<1x256xf32>
    %c10 = arith.constant 10 : index
    %211 = memref.load %arg1[%c10] : memref<98xf32, #tpu.memory_space<smem>>
    %212 = vector.broadcast %211 : f32 to vector<1x256xf32>
    %213 = arith.mulf %212, %76 : vector<1x256xf32>
    %214 = arith.addf %210, %213 : vector<1x256xf32>
    %c59 = arith.constant 59 : index
    %215 = memref.load %arg1[%c59] : memref<98xf32, #tpu.memory_space<smem>>
    %216 = vector.broadcast %215 : f32 to vector<1x256xf32>
    %217 = arith.mulf %216, %78 : vector<1x256xf32>
    %218 = arith.addf %214, %217 : vector<1x256xf32>
    %c11 = arith.constant 11 : index
    %219 = memref.load %arg1[%c11] : memref<98xf32, #tpu.memory_space<smem>>
    %220 = vector.broadcast %219 : f32 to vector<1x256xf32>
    %221 = arith.mulf %220, %88 : vector<1x256xf32>
    %222 = arith.addf %218, %221 : vector<1x256xf32>
    %c60 = arith.constant 60 : index
    %223 = memref.load %arg1[%c60] : memref<98xf32, #tpu.memory_space<smem>>
    %224 = vector.broadcast %223 : f32 to vector<1x256xf32>
    %225 = arith.mulf %224, %93 : vector<1x256xf32>
    %226 = arith.addf %222, %225 : vector<1x256xf32>
    %c12 = arith.constant 12 : index
    %227 = memref.load %arg1[%c12] : memref<98xf32, #tpu.memory_space<smem>>
    %228 = vector.broadcast %227 : f32 to vector<1x256xf32>
    %229 = arith.mulf %228, %103 : vector<1x256xf32>
    %230 = arith.addf %226, %229 : vector<1x256xf32>
    %c61 = arith.constant 61 : index
    %231 = memref.load %arg1[%c61] : memref<98xf32, #tpu.memory_space<smem>>
    %232 = vector.broadcast %231 : f32 to vector<1x256xf32>
    %233 = arith.mulf %232, %108 : vector<1x256xf32>
    %234 = arith.addf %230, %233 : vector<1x256xf32>
    %c13 = arith.constant 13 : index
    %235 = memref.load %arg1[%c13] : memref<98xf32, #tpu.memory_space<smem>>
    %236 = vector.broadcast %235 : f32 to vector<1x256xf32>
    %237 = arith.mulf %236, %118 : vector<1x256xf32>
    %238 = arith.addf %234, %237 : vector<1x256xf32>
    %c62 = arith.constant 62 : index
    %239 = memref.load %arg1[%c62] : memref<98xf32, #tpu.memory_space<smem>>
    %240 = vector.broadcast %239 : f32 to vector<1x256xf32>
    %241 = arith.mulf %240, %123 : vector<1x256xf32>
    %242 = arith.addf %238, %241 : vector<1x256xf32>
    %cst_41 = arith.constant 0.000000e+00 : f32
    %243 = vector.broadcast %cst_41 : f32 to vector<1x32xf32>
    %244 = vector.extract_strided_slice %242 {offsets = [0, 0], sizes = [1, 224], strides = [1, 1]} : vector<1x256xf32> to vector<1x224xf32>
    %245 = tpu.concatenate %243, %244 in 1 : vector<1x32xf32>, vector<1x224xf32> -> vector<1x256xf32>
    %246 = arith.addf %185, %245 : vector<1x256xf32>
    %cst_42 = arith.constant 0.000000e+00 : f32
    %247 = vector.broadcast %cst_42 : f32 to vector<1x256xf32>
    %c14 = arith.constant 14 : index
    %248 = memref.load %arg1[%c14] : memref<98xf32, #tpu.memory_space<smem>>
    %249 = vector.broadcast %248 : f32 to vector<1x256xf32>
    %250 = arith.mulf %249, %34 : vector<1x256xf32>
    %251 = arith.addf %247, %250 : vector<1x256xf32>
    %c63 = arith.constant 63 : index
    %252 = memref.load %arg1[%c63] : memref<98xf32, #tpu.memory_space<smem>>
    %253 = vector.broadcast %252 : f32 to vector<1x256xf32>
    %254 = arith.mulf %253, %39 : vector<1x256xf32>
    %255 = arith.addf %251, %254 : vector<1x256xf32>
    %c15 = arith.constant 15 : index
    %256 = memref.load %arg1[%c15] : memref<98xf32, #tpu.memory_space<smem>>
    %257 = vector.broadcast %256 : f32 to vector<1x256xf32>
    %258 = arith.mulf %257, %49 : vector<1x256xf32>
    %259 = arith.addf %255, %258 : vector<1x256xf32>
    %c64 = arith.constant 64 : index
    %260 = memref.load %arg1[%c64] : memref<98xf32, #tpu.memory_space<smem>>
    %261 = vector.broadcast %260 : f32 to vector<1x256xf32>
    %262 = arith.mulf %261, %54 : vector<1x256xf32>
    %263 = arith.addf %259, %262 : vector<1x256xf32>
    %c16 = arith.constant 16 : index
    %264 = memref.load %arg1[%c16] : memref<98xf32, #tpu.memory_space<smem>>
    %265 = vector.broadcast %264 : f32 to vector<1x256xf32>
    %266 = arith.mulf %265, %64 : vector<1x256xf32>
    %267 = arith.addf %263, %266 : vector<1x256xf32>
    %c65 = arith.constant 65 : index
    %268 = memref.load %arg1[%c65] : memref<98xf32, #tpu.memory_space<smem>>
    %269 = vector.broadcast %268 : f32 to vector<1x256xf32>
    %270 = arith.mulf %269, %69 : vector<1x256xf32>
    %271 = arith.addf %267, %270 : vector<1x256xf32>
    %c17 = arith.constant 17 : index
    %272 = memref.load %arg1[%c17] : memref<98xf32, #tpu.memory_space<smem>>
    %273 = vector.broadcast %272 : f32 to vector<1x256xf32>
    %274 = arith.mulf %273, %76 : vector<1x256xf32>
    %275 = arith.addf %271, %274 : vector<1x256xf32>
    %c66 = arith.constant 66 : index
    %276 = memref.load %arg1[%c66] : memref<98xf32, #tpu.memory_space<smem>>
    %277 = vector.broadcast %276 : f32 to vector<1x256xf32>
    %278 = arith.mulf %277, %78 : vector<1x256xf32>
    %279 = arith.addf %275, %278 : vector<1x256xf32>
    %c18 = arith.constant 18 : index
    %280 = memref.load %arg1[%c18] : memref<98xf32, #tpu.memory_space<smem>>
    %281 = vector.broadcast %280 : f32 to vector<1x256xf32>
    %282 = arith.mulf %281, %88 : vector<1x256xf32>
    %283 = arith.addf %279, %282 : vector<1x256xf32>
    %c67 = arith.constant 67 : index
    %284 = memref.load %arg1[%c67] : memref<98xf32, #tpu.memory_space<smem>>
    %285 = vector.broadcast %284 : f32 to vector<1x256xf32>
    %286 = arith.mulf %285, %93 : vector<1x256xf32>
    %287 = arith.addf %283, %286 : vector<1x256xf32>
    %c19 = arith.constant 19 : index
    %288 = memref.load %arg1[%c19] : memref<98xf32, #tpu.memory_space<smem>>
    %289 = vector.broadcast %288 : f32 to vector<1x256xf32>
    %290 = arith.mulf %289, %103 : vector<1x256xf32>
    %291 = arith.addf %287, %290 : vector<1x256xf32>
    %c68 = arith.constant 68 : index
    %292 = memref.load %arg1[%c68] : memref<98xf32, #tpu.memory_space<smem>>
    %293 = vector.broadcast %292 : f32 to vector<1x256xf32>
    %294 = arith.mulf %293, %108 : vector<1x256xf32>
    %295 = arith.addf %291, %294 : vector<1x256xf32>
    %c20 = arith.constant 20 : index
    %296 = memref.load %arg1[%c20] : memref<98xf32, #tpu.memory_space<smem>>
    %297 = vector.broadcast %296 : f32 to vector<1x256xf32>
    %298 = arith.mulf %297, %118 : vector<1x256xf32>
    %299 = arith.addf %295, %298 : vector<1x256xf32>
    %c69 = arith.constant 69 : index
    %300 = memref.load %arg1[%c69] : memref<98xf32, #tpu.memory_space<smem>>
    %301 = vector.broadcast %300 : f32 to vector<1x256xf32>
    %302 = arith.mulf %301, %123 : vector<1x256xf32>
    %303 = arith.addf %299, %302 : vector<1x256xf32>
    %cst_43 = arith.constant 0.000000e+00 : f32
    %304 = vector.broadcast %cst_43 : f32 to vector<1x16xf32>
    %305 = vector.extract_strided_slice %303 {offsets = [0, 0], sizes = [1, 240], strides = [1, 1]} : vector<1x256xf32> to vector<1x240xf32>
    %306 = tpu.concatenate %304, %305 in 1 : vector<1x16xf32>, vector<1x240xf32> -> vector<1x256xf32>
    %307 = arith.addf %246, %306 : vector<1x256xf32>
    %cst_44 = arith.constant 0.000000e+00 : f32
    %308 = vector.broadcast %cst_44 : f32 to vector<1x256xf32>
    %c21 = arith.constant 21 : index
    %309 = memref.load %arg1[%c21] : memref<98xf32, #tpu.memory_space<smem>>
    %310 = vector.broadcast %309 : f32 to vector<1x256xf32>
    %311 = arith.mulf %310, %34 : vector<1x256xf32>
    %312 = arith.addf %308, %311 : vector<1x256xf32>
    %c70 = arith.constant 70 : index
    %313 = memref.load %arg1[%c70] : memref<98xf32, #tpu.memory_space<smem>>
    %314 = vector.broadcast %313 : f32 to vector<1x256xf32>
    %315 = arith.mulf %314, %39 : vector<1x256xf32>
    %316 = arith.addf %312, %315 : vector<1x256xf32>
    %c22 = arith.constant 22 : index
    %317 = memref.load %arg1[%c22] : memref<98xf32, #tpu.memory_space<smem>>
    %318 = vector.broadcast %317 : f32 to vector<1x256xf32>
    %319 = arith.mulf %318, %49 : vector<1x256xf32>
    %320 = arith.addf %316, %319 : vector<1x256xf32>
    %c71 = arith.constant 71 : index
    %321 = memref.load %arg1[%c71] : memref<98xf32, #tpu.memory_space<smem>>
    %322 = vector.broadcast %321 : f32 to vector<1x256xf32>
    %323 = arith.mulf %322, %54 : vector<1x256xf32>
    %324 = arith.addf %320, %323 : vector<1x256xf32>
    %c23 = arith.constant 23 : index
    %325 = memref.load %arg1[%c23] : memref<98xf32, #tpu.memory_space<smem>>
    %326 = vector.broadcast %325 : f32 to vector<1x256xf32>
    %327 = arith.mulf %326, %64 : vector<1x256xf32>
    %328 = arith.addf %324, %327 : vector<1x256xf32>
    %c72 = arith.constant 72 : index
    %329 = memref.load %arg1[%c72] : memref<98xf32, #tpu.memory_space<smem>>
    %330 = vector.broadcast %329 : f32 to vector<1x256xf32>
    %331 = arith.mulf %330, %69 : vector<1x256xf32>
    %332 = arith.addf %328, %331 : vector<1x256xf32>
    %c24 = arith.constant 24 : index
    %333 = memref.load %arg1[%c24] : memref<98xf32, #tpu.memory_space<smem>>
    %334 = vector.broadcast %333 : f32 to vector<1x256xf32>
    %335 = arith.mulf %334, %76 : vector<1x256xf32>
    %336 = arith.addf %332, %335 : vector<1x256xf32>
    %c73 = arith.constant 73 : index
    %337 = memref.load %arg1[%c73] : memref<98xf32, #tpu.memory_space<smem>>
    %338 = vector.broadcast %337 : f32 to vector<1x256xf32>
    %339 = arith.mulf %338, %78 : vector<1x256xf32>
    %340 = arith.addf %336, %339 : vector<1x256xf32>
    %c25 = arith.constant 25 : index
    %341 = memref.load %arg1[%c25] : memref<98xf32, #tpu.memory_space<smem>>
    %342 = vector.broadcast %341 : f32 to vector<1x256xf32>
    %343 = arith.mulf %342, %88 : vector<1x256xf32>
    %344 = arith.addf %340, %343 : vector<1x256xf32>
    %c74 = arith.constant 74 : index
    %345 = memref.load %arg1[%c74] : memref<98xf32, #tpu.memory_space<smem>>
    %346 = vector.broadcast %345 : f32 to vector<1x256xf32>
    %347 = arith.mulf %346, %93 : vector<1x256xf32>
    %348 = arith.addf %344, %347 : vector<1x256xf32>
    %c26 = arith.constant 26 : index
    %349 = memref.load %arg1[%c26] : memref<98xf32, #tpu.memory_space<smem>>
    %350 = vector.broadcast %349 : f32 to vector<1x256xf32>
    %351 = arith.mulf %350, %103 : vector<1x256xf32>
    %352 = arith.addf %348, %351 : vector<1x256xf32>
    %c75 = arith.constant 75 : index
    %353 = memref.load %arg1[%c75] : memref<98xf32, #tpu.memory_space<smem>>
    %354 = vector.broadcast %353 : f32 to vector<1x256xf32>
    %355 = arith.mulf %354, %108 : vector<1x256xf32>
    %356 = arith.addf %352, %355 : vector<1x256xf32>
    %c27 = arith.constant 27 : index
    %357 = memref.load %arg1[%c27] : memref<98xf32, #tpu.memory_space<smem>>
    %358 = vector.broadcast %357 : f32 to vector<1x256xf32>
    %359 = arith.mulf %358, %118 : vector<1x256xf32>
    %360 = arith.addf %356, %359 : vector<1x256xf32>
    %c76 = arith.constant 76 : index
    %361 = memref.load %arg1[%c76] : memref<98xf32, #tpu.memory_space<smem>>
    %362 = vector.broadcast %361 : f32 to vector<1x256xf32>
    %363 = arith.mulf %362, %123 : vector<1x256xf32>
    %364 = arith.addf %360, %363 : vector<1x256xf32>
    %365 = arith.addf %307, %364 : vector<1x256xf32>
    %cst_45 = arith.constant 0.000000e+00 : f32
    %366 = vector.broadcast %cst_45 : f32 to vector<1x256xf32>
    %c28 = arith.constant 28 : index
    %367 = memref.load %arg1[%c28] : memref<98xf32, #tpu.memory_space<smem>>
    %368 = vector.broadcast %367 : f32 to vector<1x256xf32>
    %369 = arith.mulf %368, %34 : vector<1x256xf32>
    %370 = arith.addf %366, %369 : vector<1x256xf32>
    %c77 = arith.constant 77 : index
    %371 = memref.load %arg1[%c77] : memref<98xf32, #tpu.memory_space<smem>>
    %372 = vector.broadcast %371 : f32 to vector<1x256xf32>
    %373 = arith.mulf %372, %39 : vector<1x256xf32>
    %374 = arith.addf %370, %373 : vector<1x256xf32>
    %c29 = arith.constant 29 : index
    %375 = memref.load %arg1[%c29] : memref<98xf32, #tpu.memory_space<smem>>
    %376 = vector.broadcast %375 : f32 to vector<1x256xf32>
    %377 = arith.mulf %376, %49 : vector<1x256xf32>
    %378 = arith.addf %374, %377 : vector<1x256xf32>
    %c78 = arith.constant 78 : index
    %379 = memref.load %arg1[%c78] : memref<98xf32, #tpu.memory_space<smem>>
    %380 = vector.broadcast %379 : f32 to vector<1x256xf32>
    %381 = arith.mulf %380, %54 : vector<1x256xf32>
    %382 = arith.addf %378, %381 : vector<1x256xf32>
    %c30 = arith.constant 30 : index
    %383 = memref.load %arg1[%c30] : memref<98xf32, #tpu.memory_space<smem>>
    %384 = vector.broadcast %383 : f32 to vector<1x256xf32>
    %385 = arith.mulf %384, %64 : vector<1x256xf32>
    %386 = arith.addf %382, %385 : vector<1x256xf32>
    %c79 = arith.constant 79 : index
    %387 = memref.load %arg1[%c79] : memref<98xf32, #tpu.memory_space<smem>>
    %388 = vector.broadcast %387 : f32 to vector<1x256xf32>
    %389 = arith.mulf %388, %69 : vector<1x256xf32>
    %390 = arith.addf %386, %389 : vector<1x256xf32>
    %c31 = arith.constant 31 : index
    %391 = memref.load %arg1[%c31] : memref<98xf32, #tpu.memory_space<smem>>
    %392 = vector.broadcast %391 : f32 to vector<1x256xf32>
    %393 = arith.mulf %392, %76 : vector<1x256xf32>
    %394 = arith.addf %390, %393 : vector<1x256xf32>
    %c80 = arith.constant 80 : index
    %395 = memref.load %arg1[%c80] : memref<98xf32, #tpu.memory_space<smem>>
    %396 = vector.broadcast %395 : f32 to vector<1x256xf32>
    %397 = arith.mulf %396, %78 : vector<1x256xf32>
    %398 = arith.addf %394, %397 : vector<1x256xf32>
    %c32 = arith.constant 32 : index
    %399 = memref.load %arg1[%c32] : memref<98xf32, #tpu.memory_space<smem>>
    %400 = vector.broadcast %399 : f32 to vector<1x256xf32>
    %401 = arith.mulf %400, %88 : vector<1x256xf32>
    %402 = arith.addf %398, %401 : vector<1x256xf32>
    %c81 = arith.constant 81 : index
    %403 = memref.load %arg1[%c81] : memref<98xf32, #tpu.memory_space<smem>>
    %404 = vector.broadcast %403 : f32 to vector<1x256xf32>
    %405 = arith.mulf %404, %93 : vector<1x256xf32>
    %406 = arith.addf %402, %405 : vector<1x256xf32>
    %c33 = arith.constant 33 : index
    %407 = memref.load %arg1[%c33] : memref<98xf32, #tpu.memory_space<smem>>
    %408 = vector.broadcast %407 : f32 to vector<1x256xf32>
    %409 = arith.mulf %408, %103 : vector<1x256xf32>
    %410 = arith.addf %406, %409 : vector<1x256xf32>
    %c82 = arith.constant 82 : index
    %411 = memref.load %arg1[%c82] : memref<98xf32, #tpu.memory_space<smem>>
    %412 = vector.broadcast %411 : f32 to vector<1x256xf32>
    %413 = arith.mulf %412, %108 : vector<1x256xf32>
    %414 = arith.addf %410, %413 : vector<1x256xf32>
    %c34 = arith.constant 34 : index
    %415 = memref.load %arg1[%c34] : memref<98xf32, #tpu.memory_space<smem>>
    %416 = vector.broadcast %415 : f32 to vector<1x256xf32>
    %417 = arith.mulf %416, %118 : vector<1x256xf32>
    %418 = arith.addf %414, %417 : vector<1x256xf32>
    %c83 = arith.constant 83 : index
    %419 = memref.load %arg1[%c83] : memref<98xf32, #tpu.memory_space<smem>>
    %420 = vector.broadcast %419 : f32 to vector<1x256xf32>
    %421 = arith.mulf %420, %123 : vector<1x256xf32>
    %422 = arith.addf %418, %421 : vector<1x256xf32>
    %cst_46 = arith.constant 0.000000e+00 : f32
    %423 = vector.broadcast %cst_46 : f32 to vector<1x16xf32>
    %424 = vector.extract_strided_slice %422 {offsets = [0, 16], sizes = [1, 240], strides = [1, 1]} : vector<1x256xf32> to vector<1x240xf32>
    %425 = tpu.concatenate %424, %423 in 1 : vector<1x240xf32>, vector<1x16xf32> -> vector<1x256xf32>
    %426 = arith.addf %365, %425 : vector<1x256xf32>
    %cst_47 = arith.constant 0.000000e+00 : f32
    %427 = vector.broadcast %cst_47 : f32 to vector<1x256xf32>
    %c35 = arith.constant 35 : index
    %428 = memref.load %arg1[%c35] : memref<98xf32, #tpu.memory_space<smem>>
    %429 = vector.broadcast %428 : f32 to vector<1x256xf32>
    %430 = arith.mulf %429, %34 : vector<1x256xf32>
    %431 = arith.addf %427, %430 : vector<1x256xf32>
    %c84 = arith.constant 84 : index
    %432 = memref.load %arg1[%c84] : memref<98xf32, #tpu.memory_space<smem>>
    %433 = vector.broadcast %432 : f32 to vector<1x256xf32>
    %434 = arith.mulf %433, %39 : vector<1x256xf32>
    %435 = arith.addf %431, %434 : vector<1x256xf32>
    %c36 = arith.constant 36 : index
    %436 = memref.load %arg1[%c36] : memref<98xf32, #tpu.memory_space<smem>>
    %437 = vector.broadcast %436 : f32 to vector<1x256xf32>
    %438 = arith.mulf %437, %49 : vector<1x256xf32>
    %439 = arith.addf %435, %438 : vector<1x256xf32>
    %c85 = arith.constant 85 : index
    %440 = memref.load %arg1[%c85] : memref<98xf32, #tpu.memory_space<smem>>
    %441 = vector.broadcast %440 : f32 to vector<1x256xf32>
    %442 = arith.mulf %441, %54 : vector<1x256xf32>
    %443 = arith.addf %439, %442 : vector<1x256xf32>
    %c37 = arith.constant 37 : index
    %444 = memref.load %arg1[%c37] : memref<98xf32, #tpu.memory_space<smem>>
    %445 = vector.broadcast %444 : f32 to vector<1x256xf32>
    %446 = arith.mulf %445, %64 : vector<1x256xf32>
    %447 = arith.addf %443, %446 : vector<1x256xf32>
    %c86 = arith.constant 86 : index
    %448 = memref.load %arg1[%c86] : memref<98xf32, #tpu.memory_space<smem>>
    %449 = vector.broadcast %448 : f32 to vector<1x256xf32>
    %450 = arith.mulf %449, %69 : vector<1x256xf32>
    %451 = arith.addf %447, %450 : vector<1x256xf32>
    %c38 = arith.constant 38 : index
    %452 = memref.load %arg1[%c38] : memref<98xf32, #tpu.memory_space<smem>>
    %453 = vector.broadcast %452 : f32 to vector<1x256xf32>
    %454 = arith.mulf %453, %76 : vector<1x256xf32>
    %455 = arith.addf %451, %454 : vector<1x256xf32>
    %c87 = arith.constant 87 : index
    %456 = memref.load %arg1[%c87] : memref<98xf32, #tpu.memory_space<smem>>
    %457 = vector.broadcast %456 : f32 to vector<1x256xf32>
    %458 = arith.mulf %457, %78 : vector<1x256xf32>
    %459 = arith.addf %455, %458 : vector<1x256xf32>
    %c39 = arith.constant 39 : index
    %460 = memref.load %arg1[%c39] : memref<98xf32, #tpu.memory_space<smem>>
    %461 = vector.broadcast %460 : f32 to vector<1x256xf32>
    %462 = arith.mulf %461, %88 : vector<1x256xf32>
    %463 = arith.addf %459, %462 : vector<1x256xf32>
    %c88 = arith.constant 88 : index
    %464 = memref.load %arg1[%c88] : memref<98xf32, #tpu.memory_space<smem>>
    %465 = vector.broadcast %464 : f32 to vector<1x256xf32>
    %466 = arith.mulf %465, %93 : vector<1x256xf32>
    %467 = arith.addf %463, %466 : vector<1x256xf32>
    %c40 = arith.constant 40 : index
    %468 = memref.load %arg1[%c40] : memref<98xf32, #tpu.memory_space<smem>>
    %469 = vector.broadcast %468 : f32 to vector<1x256xf32>
    %470 = arith.mulf %469, %103 : vector<1x256xf32>
    %471 = arith.addf %467, %470 : vector<1x256xf32>
    %c89 = arith.constant 89 : index
    %472 = memref.load %arg1[%c89] : memref<98xf32, #tpu.memory_space<smem>>
    %473 = vector.broadcast %472 : f32 to vector<1x256xf32>
    %474 = arith.mulf %473, %108 : vector<1x256xf32>
    %475 = arith.addf %471, %474 : vector<1x256xf32>
    %c41 = arith.constant 41 : index
    %476 = memref.load %arg1[%c41] : memref<98xf32, #tpu.memory_space<smem>>
    %477 = vector.broadcast %476 : f32 to vector<1x256xf32>
    %478 = arith.mulf %477, %118 : vector<1x256xf32>
    %479 = arith.addf %475, %478 : vector<1x256xf32>
    %c90 = arith.constant 90 : index
    %480 = memref.load %arg1[%c90] : memref<98xf32, #tpu.memory_space<smem>>
    %481 = vector.broadcast %480 : f32 to vector<1x256xf32>
    %482 = arith.mulf %481, %123 : vector<1x256xf32>
    %483 = arith.addf %479, %482 : vector<1x256xf32>
    %cst_48 = arith.constant 0.000000e+00 : f32
    %484 = vector.broadcast %cst_48 : f32 to vector<1x32xf32>
    %485 = vector.extract_strided_slice %483 {offsets = [0, 32], sizes = [1, 224], strides = [1, 1]} : vector<1x256xf32> to vector<1x224xf32>
    %486 = tpu.concatenate %485, %484 in 1 : vector<1x224xf32>, vector<1x32xf32> -> vector<1x256xf32>
    %487 = arith.addf %426, %486 : vector<1x256xf32>
    %cst_49 = arith.constant 0.000000e+00 : f32
    %488 = vector.broadcast %cst_49 : f32 to vector<1x256xf32>
    %c42 = arith.constant 42 : index
    %489 = memref.load %arg1[%c42] : memref<98xf32, #tpu.memory_space<smem>>
    %490 = vector.broadcast %489 : f32 to vector<1x256xf32>
    %491 = arith.mulf %490, %34 : vector<1x256xf32>
    %492 = arith.addf %488, %491 : vector<1x256xf32>
    %c91 = arith.constant 91 : index
    %493 = memref.load %arg1[%c91] : memref<98xf32, #tpu.memory_space<smem>>
    %494 = vector.broadcast %493 : f32 to vector<1x256xf32>
    %495 = arith.mulf %494, %39 : vector<1x256xf32>
    %496 = arith.addf %492, %495 : vector<1x256xf32>
    %c43 = arith.constant 43 : index
    %497 = memref.load %arg1[%c43] : memref<98xf32, #tpu.memory_space<smem>>
    %498 = vector.broadcast %497 : f32 to vector<1x256xf32>
    %499 = arith.mulf %498, %49 : vector<1x256xf32>
    %500 = arith.addf %496, %499 : vector<1x256xf32>
    %c92 = arith.constant 92 : index
    %501 = memref.load %arg1[%c92] : memref<98xf32, #tpu.memory_space<smem>>
    %502 = vector.broadcast %501 : f32 to vector<1x256xf32>
    %503 = arith.mulf %502, %54 : vector<1x256xf32>
    %504 = arith.addf %500, %503 : vector<1x256xf32>
    %c44 = arith.constant 44 : index
    %505 = memref.load %arg1[%c44] : memref<98xf32, #tpu.memory_space<smem>>
    %506 = vector.broadcast %505 : f32 to vector<1x256xf32>
    %507 = arith.mulf %506, %64 : vector<1x256xf32>
    %508 = arith.addf %504, %507 : vector<1x256xf32>
    %c93 = arith.constant 93 : index
    %509 = memref.load %arg1[%c93] : memref<98xf32, #tpu.memory_space<smem>>
    %510 = vector.broadcast %509 : f32 to vector<1x256xf32>
    %511 = arith.mulf %510, %69 : vector<1x256xf32>
    %512 = arith.addf %508, %511 : vector<1x256xf32>
    %c45 = arith.constant 45 : index
    %513 = memref.load %arg1[%c45] : memref<98xf32, #tpu.memory_space<smem>>
    %514 = vector.broadcast %513 : f32 to vector<1x256xf32>
    %515 = arith.mulf %514, %76 : vector<1x256xf32>
    %516 = arith.addf %512, %515 : vector<1x256xf32>
    %c94 = arith.constant 94 : index
    %517 = memref.load %arg1[%c94] : memref<98xf32, #tpu.memory_space<smem>>
    %518 = vector.broadcast %517 : f32 to vector<1x256xf32>
    %519 = arith.mulf %518, %78 : vector<1x256xf32>
    %520 = arith.addf %516, %519 : vector<1x256xf32>
    %c46 = arith.constant 46 : index
    %521 = memref.load %arg1[%c46] : memref<98xf32, #tpu.memory_space<smem>>
    %522 = vector.broadcast %521 : f32 to vector<1x256xf32>
    %523 = arith.mulf %522, %88 : vector<1x256xf32>
    %524 = arith.addf %520, %523 : vector<1x256xf32>
    %c95 = arith.constant 95 : index
    %525 = memref.load %arg1[%c95] : memref<98xf32, #tpu.memory_space<smem>>
    %526 = vector.broadcast %525 : f32 to vector<1x256xf32>
    %527 = arith.mulf %526, %93 : vector<1x256xf32>
    %528 = arith.addf %524, %527 : vector<1x256xf32>
    %c47 = arith.constant 47 : index
    %529 = memref.load %arg1[%c47] : memref<98xf32, #tpu.memory_space<smem>>
    %530 = vector.broadcast %529 : f32 to vector<1x256xf32>
    %531 = arith.mulf %530, %103 : vector<1x256xf32>
    %532 = arith.addf %528, %531 : vector<1x256xf32>
    %c96 = arith.constant 96 : index
    %533 = memref.load %arg1[%c96] : memref<98xf32, #tpu.memory_space<smem>>
    %534 = vector.broadcast %533 : f32 to vector<1x256xf32>
    %535 = arith.mulf %534, %108 : vector<1x256xf32>
    %536 = arith.addf %532, %535 : vector<1x256xf32>
    %c48 = arith.constant 48 : index
    %537 = memref.load %arg1[%c48] : memref<98xf32, #tpu.memory_space<smem>>
    %538 = vector.broadcast %537 : f32 to vector<1x256xf32>
    %539 = arith.mulf %538, %118 : vector<1x256xf32>
    %540 = arith.addf %536, %539 : vector<1x256xf32>
    %c97 = arith.constant 97 : index
    %541 = memref.load %arg1[%c97] : memref<98xf32, #tpu.memory_space<smem>>
    %542 = vector.broadcast %541 : f32 to vector<1x256xf32>
    %543 = arith.mulf %542, %123 : vector<1x256xf32>
    %544 = arith.addf %540, %543 : vector<1x256xf32>
    %cst_50 = arith.constant 0.000000e+00 : f32
    %545 = vector.broadcast %cst_50 : f32 to vector<1x48xf32>
    %546 = vector.extract_strided_slice %544 {offsets = [0, 48], sizes = [1, 208], strides = [1, 1]} : vector<1x256xf32> to vector<1x208xf32>
    %547 = tpu.concatenate %546, %545 in 1 : vector<1x208xf32>, vector<1x48xf32> -> vector<1x256xf32>
    %548 = arith.addf %487, %547 : vector<1x256xf32>
    %cst_51 = arith.constant 5.000000e-01 : f32
    %549 = vector.broadcast %cst_51 : f32 to vector<1x256xf32>
    %550 = arith.mulf %549, %548 : vector<1x256xf32>
    %551 = math.tanh %550 : vector<1x256xf32>
    %cst_52 = arith.constant 1.000000e+00 : f32
    %552 = vector.broadcast %cst_52 : f32 to vector<1x256xf32>
    %553 = arith.addf %551, %552 : vector<1x256xf32>
    %cst_53 = arith.constant 5.000000e-01 : f32
    %554 = vector.broadcast %cst_53 : f32 to vector<1x256xf32>
    %555 = arith.mulf %554, %553 : vector<1x256xf32>
    %c0_54 = arith.constant 0 : index
    %c0_55 = arith.constant 0 : index
    %c0_56 = arith.constant 0 : index
    %556 = vector.load %arg2[%c0_54, %c0_55, %c0_56] : memref<1x4x256xf32, #tpu.memory_space<vmem>>, vector<1x4x256xf32>
    %557 = vector.shape_cast %556 : vector<1x4x256xf32> to vector<4x256xf32>
    %558 = vector.broadcast %555 : vector<1x256xf32> to vector<4x256xf32>
    %559 = arith.mulf %557, %558 : vector<4x256xf32>
    %c0_57 = arith.constant 0 : index
    %c0_58 = arith.constant 0 : index
    %c0_59 = arith.constant 0 : index
    %560 = vector.load %arg3[%c0_57, %c0_58, %c0_59] : memref<1x4x256xf32, #tpu.memory_space<vmem>>, vector<1x4x256xf32>
    %561 = vector.shape_cast %560 : vector<1x4x256xf32> to vector<4x256xf32>
    %562 = vector.shape_cast %559 : vector<4x256xf32> to vector<1x4x256xf32>
    tpu.vector_store %arg3[%c0_57, %c0_58, %c0_59], %562 {strides = array<i32>} : memref<1x4x256xf32, #tpu.memory_space<vmem>>, vector<1x4x256xf32>,
    return
  }
  func.func @transform_0(%arg0: i32) -> i32 {
    %c0_i32 = arith.constant 0 : i32
    %c0_i32_0 = arith.constant 0 : i32
    return %c0_i32 : i32
  }
  func.func @transform_1(%arg0: i32) -> (i32, i32, i32) {
    %c0_i32 = arith.constant 0 : i32
    %c0_i32_0 = arith.constant 0 : i32
    %c0_i32_1 = arith.constant 0 : i32
    return %arg0, %c0_i32, %c0_i32_0 : i32, i32, i32
  }
  func.func @transform_2(%arg0: i32) -> (i32, i32, i32) {
    %c0_i32 = arith.constant 0 : i32
    %c0_i32_0 = arith.constant 0 : i32
    %c0_i32_1 = arith.constant 0 : i32
    return %arg0, %c0_i32, %c0_i32_0 : i32, i32, i32
  }
}

</mosaic_0001>

<llo_original>
// kernel: tpu_custom_call.1
$region0: #{tpu_custom_call.1}
  #allocation0 [shape = 'u32[]', space=smem, size = 0x4, offset = 0x4, fixed_abs, tag = 'smem constant byte address 0x4 - core index']
  #allocation1 [shape = 'u32[144,128]{1,0:T(1,128)}', space=vmem, size = 0x12000, scoped, tag = 'internal scratch']
  %s0 = inlined_call_operand.hbm [shape: f32[98], index: 0, kind: input, shape index: {}]
  %s1 = inlined_call_operand.hbm [shape: f32[2,4,256], index: 1, kind: input, shape index: {}]
  %s2 = inlined_call_operand.hbm [shape: f32[2,4,256], index: 2, kind: output, shape index: {}]
  %s3 = sld [smem:[#allocation0]]
  $region49: #{tpu_custom_call.1} parent=0
    _
  %s5 = ssub.s32 1, %s3
  %s6 = scalar_select 0, %s5, %s3
  $region1: #{tpu_custom_call.1} parent=0
    #allocation2 [shape = 'u8[512]{0}', space=smem, size = 0x200, scoped, tag = 'input window, operand 0, single buffered']
    #allocation3 [shape = 's32[2]{0}', space=sflag, size = 0x8, scoped, tag = 'scoped memory for tpu_custom_call.1']
    #allocation4 [shape = 's32[2]{0}', space=sflag, size = 0x8, scoped, tag = 'scoped memory for tpu_custom_call.1']
    #allocation5 [shape = 's32[2]{0}', space=sflag, size = 0x8, scoped, tag = 'scoped memory for tpu_custom_call.1']
    #allocation6 [shape = 'u8[8192]{0}', space=vmem, size = 0x2000, scoped, tag = 'input window, operand 1']
    #allocation7 [shape = 'u8[8192]{0}', space=vmem, size = 0x2000, scoped, tag = 'output window, operand 0']
    %7 = vsyncpa [#allocation5], 0
    %8 = vsyncpa [#allocation3], 0
    %s9 = scalar_lea.sflag [#allocation3], 1
    %10 = vsyncpa %s9, 0
    %11 = vsyncpa [#allocation4], 0
    %s12 = scalar_lea.sflag [#allocation4], 1
    %13 = vsyncpa %s12, 0
    loop: start=0, step=1, limit=4
    $region2: #{tpu_custom_call.1} parent=1 // loop_pre_header
      _
    $region3: #{tpu_custom_call.1} parent=1 // loop_header
      %s15 = sphi 0, %s19
      %p16 = scmp.ge.s32.totalorder %s15, 4
      %s23 = sphi 0, %s23
      %s25 = sphi 0, %s23
      %s26 = sphi 0, %s25
      %s40 = sphi 0, %s26
      %s46 = sphi 0, %s48
      %s49 = sphi 0, %s46
      %s50 = sphi 0, %s49
      %s66 = sphi 0, %s50
      %s72 = sphi 0, %s74
      %s75 = sphi 0, %s72
      %s76 = sphi 0, %s75
      %s92 = sphi 0, %s76
    $region4: #{tpu_custom_call.1} parent=1 // loop_header_branch
      %18 = sbr.rel (%p16) target = $region8
    $region5: #{tpu_custom_call.1} parent=1 // loop_body
      %s20 = ssub.s32 %s15, 1
      %s21 = ssub.s32 %s15, 2
      %s22 = sadd.s32 %s15, 1
      %s24 = sadd.s32 %s23, 1
      %p27 = scmp.eq.s32.totalorder %s15, 1
      %p28 = scmp.ne.s32.totalorder %s23, %s25
      %p29 = scmp.eq.s32.totalorder %s15, 0
      %p30 = por %p28, %p29
      %p31 = scmp.ne.s32.totalorder %s23, %s25
      %p32 = scmp.eq.s32.totalorder %s20, 1
      %p33 = por %p31, %p32
      %p34 = scmp.ne.s32.totalorder %s25, %s26
      %p35 = scmp.eq.s32.totalorder %s20, 0
      %p36 = por %p34, %p35
      %p37 = scmp.ne.s32.totalorder %s25, %s26
      %p38 = scmp.eq.s32.totalorder %s21, 1
      %p39 = por %p37, %p38
      %p41 = scmp.ne.s32.totalorder %s26, %s40
      %p42 = scmp.eq.s32.totalorder %s21, 0
      %p43 = por %p41, %p42
      %s44 = ssub.s32 %s15, %s22
      %p45 = scmp.eq.s32.totalorder %s44, 0
      %s47 = sadd.s32 %s46, 1
      %s48 = scalar_select %p45, %s46, %s47
      %p51 = pneg %p45
      %p52 = scmp.eq.s32.totalorder %s15, 1
      %p53 = por %p51, %p52
      %p54 = scmp.ne.s32.totalorder %s46, %s49
      %p55 = scmp.eq.s32.totalorder %s15, 0
      %p56 = por %p54, %p55
      %p57 = scmp.ne.s32.totalorder %s46, %s49
      %p58 = scmp.eq.s32.totalorder %s20, 1
      %p59 = por %p57, %p58
      %p60 = scmp.ne.s32.totalorder %s49, %s50
      %p61 = scmp.eq.s32.totalorder %s20, 0
      %p62 = por %p60, %p61
      %p63 = scmp.ne.s32.totalorder %s49, %s50
      %p64 = scmp.eq.s32.totalorder %s21, 1
      %p65 = por %p63, %p64
      %p67 = scmp.ne.s32.totalorder %s50, %s66
      %p68 = scmp.eq.s32.totalorder %s21, 0
      %p69 = por %p67, %p68
      %s70 = ssub.s32 %s15, %s22
      %p71 = scmp.eq.s32.totalorder %s70, 0
      %s73 = sadd.s32 %s72, 1
      %s74 = scalar_select %p71, %s72, %s73
      %p77 = pneg %p71
      %p78 = scmp.eq.s32.totalorder %s15, 1
      %p79 = por %p77, %p78
      %p80 = scmp.ne.s32.totalorder %s72, %s75
      %p81 = scmp.eq.s32.totalorder %s15, 0
      %p82 = por %p80, %p81
      %p83 = scmp.ne.s32.totalorder %s72, %s75
      %p84 = scmp.eq.s32.totalorder %s20, 1
      %p85 = por %p83, %p84
      %p86 = scmp.ne.s32.totalorder %s75, %s76
      %p87 = scmp.eq.s32.totalorder %s20, 0
      %p88 = por %p86, %p87
      %p89 = scmp.ne.s32.totalorder %s75, %s76
      %p90 = scmp.eq.s32.totalorder %s21, 1
      %p91 = por %p89, %p90
      %p93 = scmp.ne.s32.totalorder %s76, %s92
      %p94 = scmp.eq.s32.totalorder %s21, 0
      %p95 = por %p93, %p94
      %p96 = scmp.le.s32.totalorder 1, %s15
      %p97 = scmp.lt.s32.totalorder %s15, 3
      %p98 = pnand %p96, %p97
      %p99 = pneg %p98
      // Predicated region
      $region9: #{tpu_custom_call.1} parent=5 // pred_check
        _
      $region10: #{tpu_custom_call.1} parent=5 // pred_check_branch
        %101 = sbr.rel (%p98) target = $region12
      $region11: #{tpu_custom_call.1} parent=5 // pred_region
        %s102 = ssub.s32 %s15, 1
        // Predicated region
        $region13: #{tpu_custom_call.1} parent=11 // pred_check
          %p103 = pneg %p36
        $region14: #{tpu_custom_call.1} parent=11 // pred_check_branch
          %105 = sbr.rel (%p103) target = $region16
        $region15: #{tpu_custom_call.1} parent=11 // pred_region
          %s107 = ssub.s32 16, 16
          %108 = vsyncadd [#allocation5], %s107
          %111 = dma.hbm_to_smem %s0, 16, [#allocation2], [#allocation5]
        $region16: #{tpu_custom_call.1} parent=11 // pred_fallthru
          _
      $region12: #{tpu_custom_call.1} parent=5 // pred_fallthru
        _
      %p112 = scmp.lt.s32.totalorder %s15, 2
      // Predicated region
      $region17: #{tpu_custom_call.1} parent=5 // pred_check
        %p113 = pneg %p112
      $region18: #{tpu_custom_call.1} parent=5 // pred_check_branch
        %115 = sbr.rel (%p113) target = $region20
      $region19: #{tpu_custom_call.1} parent=5 // pred_region
        // Predicated region
        $region21: #{tpu_custom_call.1} parent=19 // pred_check
          %p116 = pneg %p56
        $region22: #{tpu_custom_call.1} parent=19 // pred_check_branch
          %118 = sbr.rel (%p116) target = $region24
        $region23: #{tpu_custom_call.1} parent=19 // pred_region
          %s119 = sand.u32 %s46, 1
          %s120 = scalar_lea.sflag [#allocation3], %s119
          %s121 = sand.u32 %s46, 1
          %s122 = smul.addr %s121, 8
          %s123 = scalar_lea.vmem [#allocation6], %s122
          %s125 = ssub.s32 128, 128
          %126 = vsyncadd %s120, %s125
          %s127 = smul.addr %s15, 2
          %s128 = smul.addr %s127, 64
          %s129 = scalar_lea.hbm %s1, %s128
          %s131 = sshll.u32 %s123, 4
          %s132 = int_to_ptr.vmem [resolvable:$true] %s131
          %134 = dma.hbm_to_vmem [thread:$0]  %s129, 128, %s132, %s120
        $region24: #{tpu_custom_call.1} parent=19 // pred_fallthru
          _
      $region20: #{tpu_custom_call.1} parent=5 // pred_fallthru
        _
      %p135 = scmp.le.s32.totalorder 1, %s15
      %p136 = scmp.lt.s32.totalorder %s15, 3
      %p137 = pnand %p135, %p136
      %p138 = pneg %p137
      // Predicated region
      $region25: #{tpu_custom_call.1} parent=5 // pred_check
        _
      $region26: #{tpu_custom_call.1} parent=5 // pred_check_branch
        %140 = sbr.rel (%p137) target = $region28
      $region27: #{tpu_custom_call.1} parent=5 // pred_region
        %s141 = ssub.s32 %s15, 1
        // Predicated region
        $region29: #{tpu_custom_call.1} parent=27 // pred_check
          %p142 = pneg %p36
        $region30: #{tpu_custom_call.1} parent=27 // pred_check_branch
          %144 = sbr.rel (%p142) target = $region32
        $region31: #{tpu_custom_call.1} parent=27 // pred_region
          %145 = dma.done [#allocation5], 16
        $region32: #{tpu_custom_call.1} parent=27 // pred_fallthru
          _
        %s146 = sand.u32 %s49, 1
        %s147 = scalar_lea.sflag [#allocation3], %s146
        %s148 = sand.u32 %s49, 1
        %s149 = smul.addr %s148, 8
        %s150 = scalar_lea.vmem [#allocation6], %s149
        // Predicated region
        $region33: #{tpu_custom_call.1} parent=27 // pred_check
          %p151 = pneg %p62
        $region34: #{tpu_custom_call.1} parent=27 // pred_check_branch
          %153 = sbr.rel (%p151) target = $region36
        $region35: #{tpu_custom_call.1} parent=27 // pred_region
          %154 = dma.done %s147, 128
        $region36: #{tpu_custom_call.1} parent=27 // pred_fallthru
          _
        %155 = sfence
        %p156 = pneg %p36
        %p157 = pneg %p33
        %s158 = sand.u32 %s49, 1
        %s159 = scalar_lea.sflag [#allocation3], %s158
        %s160 = sand.u32 %s49, 1
        %s161 = smul.addr %s160, 8
        %s162 = scalar_lea.vmem [#allocation6], %s161
        %p163 = pneg %p62
        %p164 = pneg %p59
        %p165 = pneg %p88
        %p166 = pneg %p85
        %s167 = sand.u32 %s75, 1
        %s168 = scalar_lea.sflag [#allocation4], %s167
        %s169 = sand.u32 %s75, 1
        %s170 = smul.addr %s169, 8
        %s171 = scalar_lea.vmem [#allocation7], %s170
        %v172 = vlaneseq
        %v173 = vand.u32 %v172, 127
        %v174 = vadd.s32 %v173, 128
        %vm175 = vcmp.lt.s32.totalorder %v173, 0
        %v176 = vsub.s32 0, %v173
        %v177 = vsel %vm175, %v176, %v173
        %v178 = vshrl.u32 %v177, 4
        %v179 = vand.u32 %v177, 15
        %v180 = vsub.s32 0, %v179
        %v181 = vsel %vm175, %v180, %v179
        %vm182 = vcmp.lt.s32.totalorder %v174, 0
        %v183 = vsub.s32 0, %v174
        %v184 = vsel %vm182, %v183, %v174
        %v185 = vshrl.u32 %v184, 4
        %v186 = vand.u32 %v184, 15
        %v187 = vsub.s32 0, %v186
        %v188 = vsel %vm182, %v187, %v186
        %vm189 = vcmp.ne.s32.totalorder %v181, 0
        %vm190 = vcmp.ne.s32.totalorder %v188, 0
        %vm191 = vcmp.lt.s32.totalorder %v181, 0
        %vm192 = vcmp.lt.s32.totalorder %v188, 0
        %vm193 = vmand %vm191, %vm189
        %vm194 = vmand %vm192, %vm190
        %v195 = vadd.s32 %v181, 16
        %v196 = vadd.s32 %v188, 16
        %v197 = vsel %vm193, %v195, %v181
        %v198 = vsel %vm194, %v196, %v188
        %v199 = vld [vmem:[%s150] sm:$0xff]
        %v201 = vcombine.high %v199, %v199
        %vm203 = vcmask 1043456
        %v204 = vsel %vm203, %v199, -inf
        %v205 = vrot.slane %v204, 4
        %v206 = vmax.f32 %v204, %v205
        %v207 = vrot.slane %v206, 2
        %v208 = vmax.f32 %v206, %v207
        %v209 = vrot.slane %v208, 1
        %v210 = vmax.f32 %v208, %v209
        %v211 = vsel %vm203, %v201, -inf
        %v212 = vrot.slane %v211, 4
        %v213 = vmax.f32 %v211, %v212
        %v214 = vrot.slane %v213, 2
        %v215 = vmax.f32 %v213, %v214
        %v216 = vrot.slane %v215, 1
        %v217 = vmax.f32 %v215, %v216
        %v218 = vsel %vm203, %v199, 0.0
        %v219 = vrot.slane %v218, 4
        %v220 = vadd.f32 %v218, %v219
        %v221 = vrot.slane %v220, 2
        %v222 = vadd.f32 %v220, %v221
        %v223 = vrot.slane %v222, 1
        %v224 = vadd.f32 %v222, %v223
        %v225 = vsel %vm203, %v201, 0.0
        %v226 = vrot.slane %v225, 4
        %v227 = vadd.f32 %v225, %v226
        %v228 = vrot.slane %v227, 2
        %v229 = vadd.f32 %v227, %v228
        %v230 = vrot.slane %v229, 1
        %v231 = vadd.f32 %v229, %v230
        %v232 = vrcp.pop 4.0
        %v233 = vmul.f32 %v224, %v232
        %v234 = vmul.f32 %v231, %v232
        %vm235 = vcmp.ge.s32.totalorder %v197, 3
        %vm236 = vcmp.ge.s32.totalorder %v198, 3
        %vm237 = vcmp.lt.s32.totalorder %v197, 19
        %vm238 = vcmp.lt.s32.totalorder %v198, 19
        %vm239 = vmand %vm235, %vm237
        %vm240 = vmand %vm236, %vm238
        %243 = vrot.lane.b32.xlu0 %v233, 3
        %v244 = vpop.permute.xlu0 %243
        %245 = vrot.lane.b32.xlu0 %v234, 3
        %v246 = vpop.permute.xlu0 %245
        %vm247 = vcmask 23552
        %v248 = vsel %vm247, %v244, %v246
        %v251 = vsel %vm247, 0.0, %v244
        %v252 = vsel %vm239, %v251, 0.0
        %v253 = vsel %vm240, %v248, 0.0
        %256 = vrot.lane.b32.xlu0 %v210, 3
        %v257 = vpop.permute.xlu0 %256
        %258 = vrot.lane.b32.xlu0 %v217, 3
        %v259 = vpop.permute.xlu0 %258
        %v260 = vsel %vm247, %v257, %v259
        %v263 = vsel %vm247, 0.0, %v257
        %v264 = vsel %vm239, %v263, 0.0
        %v265 = vsel %vm240, %v260, 0.0
        %vm266 = vcmp.ge.s32.totalorder %v197, 2
        %vm267 = vcmp.ge.s32.totalorder %v198, 2
        %vm268 = vcmp.lt.s32.totalorder %v197, 18
        %vm269 = vcmp.lt.s32.totalorder %v198, 18
        %vm270 = vmand %vm266, %vm268
        %vm271 = vmand %vm267, %vm269
        %272 = vrot.lane.b32.xlu0 %v233, 2
        %v273 = vpop.permute.xlu0 %272
        %274 = vrot.lane.b32.xlu0 %v234, 2
        %v275 = vpop.permute.xlu0 %274
        %vm276 = vcmask 15360
        %v277 = vsel %vm276, %v273, %v275
        %v280 = vsel %vm276, 0.0, %v273
        %v281 = vsel %vm270, %v280, 0.0
        %v282 = vsel %vm271, %v277, 0.0
        %283 = vrot.lane.b32.xlu0 %v210, 2
        %v284 = vpop.permute.xlu0 %283
        %285 = vrot.lane.b32.xlu0 %v217, 2
        %v286 = vpop.permute.xlu0 %285
        %v287 = vsel %vm276, %v284, %v286
        %v290 = vsel %vm276, 0.0, %v284
        %v291 = vsel %vm270, %v290, 0.0
        %v292 = vsel %vm271, %v287, 0.0
        %vm293 = vcmp.ge.s32.totalorder %v197, 1
        %vm294 = vcmp.ge.s32.totalorder %v198, 1
        %vm295 = vcmp.lt.s32.totalorder %v197, 17
        %vm296 = vcmp.lt.s32.totalorder %v198, 17
        %vm297 = vmand %vm293, %vm295
        %vm298 = vmand %vm294, %vm296
        %299 = vrot.lane.b32.xlu0 %v233, 1
        %v300 = vpop.permute.xlu0 %299
        %301 = vrot.lane.b32.xlu0 %v234, 1
        %v302 = vpop.permute.xlu0 %301
        %vm303 = vcmask 7168
        %v304 = vsel %vm303, %v300, %v302
        %v307 = vsel %vm303, 0.0, %v300
        %v308 = vsel %vm297, %v307, 0.0
        %v309 = vsel %vm298, %v304, 0.0
        %310 = vrot.lane.b32.xlu0 %v210, 1
        %v311 = vpop.permute.xlu0 %310
        %312 = vrot.lane.b32.xlu0 %v217, 1
        %v313 = vpop.permute.xlu0 %312
        %v314 = vsel %vm303, %v311, %v313
        %v317 = vsel %vm303, 0.0, %v311
        %v318 = vsel %vm297, %v317, 0.0
        %v319 = vsel %vm298, %v314, 0.0
        %vm320 = vcmp.ge.s32.totalorder %v197, 0
        %vm321 = vcmp.ge.s32.totalorder %v198, 0
        %vm322 = vcmp.lt.s32.totalorder %v197, 16
        %vm323 = vcmp.lt.s32.totalorder %v198, 16
        %vm324 = vmand %vm320, %vm322
        %vm325 = vmand %vm321, %vm323
        %v326 = vsel %vm324, %v233, 0.0
        %v327 = vsel %vm325, %v234, 0.0
        %v328 = vsel %vm324, %v210, 0.0
        %v329 = vsel %vm325, %v217, 0.0
        %vm330 = vcmp.ge.s32.totalorder %v197, 4294967295
        %vm331 = vcmp.ge.s32.totalorder %v198, 4294967295
        %vm332 = vcmp.lt.s32.totalorder %v197, 15
        %vm333 = vcmp.lt.s32.totalorder %v198, 15
        %vm334 = vmand %vm330, %vm332
        %vm335 = vmand %vm331, %vm333
        %336 = vrot.lane.b32.xlu0 %v233, 127
        %v337 = vpop.permute.xlu0 %336
        %338 = vrot.lane.b32.xlu0 %v234, 127
        %v339 = vpop.permute.xlu0 %338
        %vm340 = vcmask 1039360
        %v341 = vsel %vm340, %v337, %v339
        %v344 = vsel %vm340, %v339, 0.0
        %v345 = vsel %vm334, %v341, 0.0
        %v346 = vsel %vm335, %v344, 0.0
        %347 = vrot.lane.b32.xlu0 %v210, 127
        %v348 = vpop.permute.xlu0 %347
        %349 = vrot.lane.b32.xlu0 %v217, 127
        %v350 = vpop.permute.xlu0 %349
        %v351 = vsel %vm340, %v348, %v350
        %v354 = vsel %vm340, %v350, 0.0
        %v355 = vsel %vm334, %v351, 0.0
        %v356 = vsel %vm335, %v354, 0.0
        %vm357 = vcmp.ge.s32.totalorder %v197, 4294967294
        %vm358 = vcmp.ge.s32.totalorder %v198, 4294967294
        %vm359 = vcmp.lt.s32.totalorder %v197, 14
        %vm360 = vcmp.lt.s32.totalorder %v198, 14
        %vm361 = vmand %vm357, %vm359
        %vm362 = vmand %vm358, %vm360
        %363 = vrot.lane.b32.xlu0 %v233, 126
        %v364 = vpop.permute.xlu0 %363
        %365 = vrot.lane.b32.xlu0 %v234, 126
        %v366 = vpop.permute.xlu0 %365
        %vm367 = vcmask 1031168
        %v368 = vsel %vm367, %v364, %v366
        %v371 = vsel %vm367, %v366, 0.0
        %v372 = vsel %vm361, %v368, 0.0
        %v373 = vsel %vm362, %v371, 0.0
        %374 = vrot.lane.b32.xlu0 %v210, 126
        %v375 = vpop.permute.xlu0 %374
        %376 = vrot.lane.b32.xlu0 %v217, 126
        %v377 = vpop.permute.xlu0 %376
        %v378 = vsel %vm367, %v375, %v377
        %v381 = vsel %vm367, %v377, 0.0
        %v382 = vsel %vm361, %v378, 0.0
        %v383 = vsel %vm362, %v381, 0.0
        %vm384 = vcmp.ge.s32.totalorder %v197, 4294967293
        %vm385 = vcmp.ge.s32.totalorder %v198, 4294967293
        %vm386 = vcmp.lt.s32.totalorder %v197, 13
        %vm387 = vcmp.lt.s32.totalorder %v198, 13
        %vm388 = vmand %vm384, %vm386
        %vm389 = vmand %vm385, %vm387
        %390 = vrot.lane.b32.xlu0 %v233, 125
        %v391 = vpop.permute.xlu0 %390
        %392 = vrot.lane.b32.xlu0 %v234, 125
        %v393 = vpop.permute.xlu0 %392
        %vm394 = vcmask 1022976
        %v395 = vsel %vm394, %v391, %v393
        %v398 = vsel %vm394, %v393, 0.0
        %v399 = vsel %vm388, %v395, 0.0
        %v400 = vsel %vm389, %v398, 0.0
        %401 = vrot.lane.b32.xlu0 %v210, 125
        %v402 = vpop.permute.xlu0 %401
        %403 = vrot.lane.b32.xlu0 %v217, 125
        %v404 = vpop.permute.xlu0 %403
        %v405 = vsel %vm394, %v402, %v404
        %v408 = vsel %vm394, %v404, 0.0
        %v409 = vsel %vm388, %v405, 0.0
        %v410 = vsel %vm389, %v408, 0.0
        %s411 = sld [smem:[#allocation2]]
        %v412 = vstv %s411
        %v413 = vmul.f32 %v412, %v252
        %v414 = vmul.f32 %v412, %v253
        %v415 = vadd.f32 %v413, 0.0
        %v416 = vadd.f32 %v414, 0.0
        %s417 = sld [smem:[#allocation2 + $0x31]]
        %v418 = vstv %s417
        %v419 = vmul.f32 %v418, %v264
        %v420 = vmul.f32 %v418, %v265
        %v421 = vadd.f32 %v415, %v419
        %v422 = vadd.f32 %v416, %v420
        %s423 = sld [smem:[#allocation2 + $0x1]]
        %v424 = vstv %s423
        %v425 = vmul.f32 %v424, %v281
        %v426 = vmul.f32 %v424, %v282
        %v427 = vadd.f32 %v421, %v425
        %v428 = vadd.f32 %v422, %v426
        %s429 = sld [smem:[#allocation2 + $0x32]]
        %v430 = vstv %s429
        %v431 = vmul.f32 %v430, %v291
        %v432 = vmul.f32 %v430, %v292
        %v433 = vadd.f32 %v427, %v431
        %v434 = vadd.f32 %v428, %v432
        %s435 = sld [smem:[#allocation2 + $0x2]]
        %v436 = vstv %s435
        %v437 = vmul.f32 %v436, %v308
        %v438 = vmul.f32 %v436, %v309
        %v439 = vadd.f32 %v433, %v437
        %v440 = vadd.f32 %v434, %v438
        %s441 = sld [smem:[#allocation2 + $0x33]]
        %v442 = vstv %s441
        %v443 = vmul.f32 %v442, %v318
        %v444 = vmul.f32 %v442, %v319
        %v445 = vadd.f32 %v439, %v443
        %v446 = vadd.f32 %v440, %v444
        %s447 = sld [smem:[#allocation2 + $0x3]]
        %v448 = vstv %s447
        %v449 = vmul.f32 %v448, %v326
        %v450 = vmul.f32 %v448, %v327
        %v451 = vadd.f32 %v445, %v449
        %v452 = vadd.f32 %v446, %v450
        %s453 = sld [smem:[#allocation2 + $0x34]]
        %v454 = vstv %s453
        %v455 = vmul.f32 %v454, %v328
        %v456 = vmul.f32 %v454, %v329
        %v457 = vadd.f32 %v451, %v455
        %v458 = vadd.f32 %v452, %v456
        %s459 = sld [smem:[#allocation2 + $0x4]]
        %v460 = vstv %s459
        %v461 = vmul.f32 %v460, %v345
        %v462 = vmul.f32 %v460, %v346
        %v463 = vadd.f32 %v457, %v461
        %v464 = vadd.f32 %v458, %v462
        %s465 = sld [smem:[#allocation2 + $0x35]]
        %v466 = vstv %s465
        %v467 = vmul.f32 %v466, %v355
        %v468 = vmul.f32 %v466, %v356
        %v469 = vadd.f32 %v463, %v467
        %v470 = vadd.f32 %v464, %v468
        %s471 = sld [smem:[#allocation2 + $0x5]]
        %v472 = vstv %s471
        %v473 = vmul.f32 %v472, %v372
        %v474 = vmul.f32 %v472, %v373
        %v475 = vadd.f32 %v469, %v473
        %v476 = vadd.f32 %v470, %v474
        %s477 = sld [smem:[#allocation2 + $0x36]]
        %v478 = vstv %s477
        %v479 = vmul.f32 %v478, %v382
        %v480 = vmul.f32 %v478, %v383
        %v481 = vadd.f32 %v475, %v479
        %v482 = vadd.f32 %v476, %v480
        %s483 = sld [smem:[#allocation2 + $0x6]]
        %v484 = vstv %s483
        %v485 = vmul.f32 %v484, %v399
        %v486 = vmul.f32 %v484, %v400
        %v487 = vadd.f32 %v481, %v485
        %v488 = vadd.f32 %v482, %v486
        %s489 = sld [smem:[#allocation2 + $0x37]]
        %v490 = vstv %s489
        %v491 = vmul.f32 %v490, %v409
        %v492 = vmul.f32 %v490, %v410
        %v493 = vadd.f32 %v487, %v491
        %v494 = vadd.f32 %v488, %v492
        %497 = vrot.lane.b32.xlu0 %v493, 48
        %v498 = vpop.permute.xlu0 %497
        %499 = vrot.lane.b32.xlu0 %v494, 48
        %v500 = vpop.permute.xlu0 %499
        %vm501 = vcmask 392192
        %v502 = vsel %vm501, %v498, %v500
        %v505 = vsel %vm501, 0.0, %v498
        %v506 = vadd.f32 %v505, 0.0
        %v507 = vadd.f32 %v502, 0.0
        %s508 = sld [smem:[#allocation2 + $0x7]]
        %v509 = vstv %s508
        %v510 = vmul.f32 %v509, %v252
        %v511 = vmul.f32 %v509, %v253
        %v512 = vadd.f32 %v510, 0.0
        %v513 = vadd.f32 %v511, 0.0
        %s514 = sld [smem:[#allocation2 + $0x38]]
        %v515 = vstv %s514
        %v516 = vmul.f32 %v515, %v264
        %v517 = vmul.f32 %v515, %v265
        %v518 = vadd.f32 %v512, %v516
        %v519 = vadd.f32 %v513, %v517
        %s520 = sld [smem:[#allocation2 + $0x8]]
        %v521 = vstv %s520
        %v522 = vmul.f32 %v521, %v281
        %v523 = vmul.f32 %v521, %v282
        %v524 = vadd.f32 %v518, %v522
        %v525 = vadd.f32 %v519, %v523
        %s526 = sld [smem:[#allocation2 + $0x39]]
        %v527 = vstv %s526
        %v528 = vmul.f32 %v527, %v291
        %v529 = vmul.f32 %v527, %v292
        %v530 = vadd.f32 %v524, %v528
        %v531 = vadd.f32 %v525, %v529
        %s532 = sld [smem:[#allocation2 + $0x9]]
        %v533 = vstv %s532
        %v534 = vmul.f32 %v533, %v308
        %v535 = vmul.f32 %v533, %v309
        %v536 = vadd.f32 %v530, %v534
        %v537 = vadd.f32 %v531, %v535
        %s538 = sld [smem:[#allocation2 + $0x3a]]
        %v539 = vstv %s538
        %v540 = vmul.f32 %v539, %v318
        %v541 = vmul.f32 %v539, %v319
        %v542 = vadd.f32 %v536, %v540
        %v543 = vadd.f32 %v537, %v541
        %s544 = sld [smem:[#allocation2 + $0xa]]
        %v545 = vstv %s544
        %v546 = vmul.f32 %v545, %v326
        %v547 = vmul.f32 %v545, %v327
        %v548 = vadd.f32 %v542, %v546
        %v549 = vadd.f32 %v543, %v547
        %s550 = sld [smem:[#allocation2 + $0x3b]]
        %v551 = vstv %s550
        %v552 = vmul.f32 %v551, %v328
        %v553 = vmul.f32 %v551, %v329
        %v554 = vadd.f32 %v548, %v552
        %v555 = vadd.f32 %v549, %v553
        %s556 = sld [smem:[#allocation2 + $0xb]]
        %v557 = vstv %s556
        %v558 = vmul.f32 %v557, %v345
        %v559 = vmul.f32 %v557, %v346
        %v560 = vadd.f32 %v554, %v558
        %v561 = vadd.f32 %v555, %v559
        %s562 = sld [smem:[#allocation2 + $0x3c]]
        %v563 = vstv %s562
        %v564 = vmul.f32 %v563, %v355
        %v565 = vmul.f32 %v563, %v356
        %v566 = vadd.f32 %v560, %v564
        %v567 = vadd.f32 %v561, %v565
        %s568 = sld [smem:[#allocation2 + $0xc]]
        %v569 = vstv %s568
        %v570 = vmul.f32 %v569, %v372
        %v571 = vmul.f32 %v569, %v373
        %v572 = vadd.f32 %v566, %v570
        %v573 = vadd.f32 %v567, %v571
        %s574 = sld [smem:[#allocation2 + $0x3d]]
        %v575 = vstv %s574
        %v576 = vmul.f32 %v575, %v382
        %v577 = vmul.f32 %v575, %v383
        %v578 = vadd.f32 %v572, %v576
        %v579 = vadd.f32 %v573, %v577
        %s580 = sld [smem:[#allocation2 + $0xd]]
        %v581 = vstv %s580
        %v582 = vmul.f32 %v581, %v399
        %v583 = vmul.f32 %v581, %v400
        %v584 = vadd.f32 %v578, %v582
        %v585 = vadd.f32 %v579, %v583
        %s586 = sld [smem:[#allocation2 + $0x3e]]
        %v587 = vstv %s586
        %v588 = vmul.f32 %v587, %v409
        %v589 = vmul.f32 %v587, %v410
        %v590 = vadd.f32 %v584, %v588
        %v591 = vadd.f32 %v585, %v589
        %594 = vrot.lane.b32.xlu0 %v590, 32
        %v595 = vpop.permute.xlu0 %594
        %596 = vrot.lane.b32.xlu0 %v591, 32
        %v597 = vpop.permute.xlu0 %596
        %vm598 = vcmask 261120
        %v599 = vsel %vm598, %v595, %v597
        %v602 = vsel %vm598, 0.0, %v595
        %v603 = vadd.f32 %v506, %v602
        %v604 = vadd.f32 %v507, %v599
        %s605 = sld [smem:[#allocation2 + $0xe]]
        %v606 = vstv %s605
        %v607 = vmul.f32 %v606, %v252
        %v608 = vmul.f32 %v606, %v253
        %v609 = vadd.f32 %v607, 0.0
        %v610 = vadd.f32 %v608, 0.0
        %s611 = sld [smem:[#allocation2 + $0x3f]]
        %v612 = vstv %s611
        %v613 = vmul.f32 %v612, %v264
        %v614 = vmul.f32 %v612, %v265
        %v615 = vadd.f32 %v609, %v613
        %v616 = vadd.f32 %v610, %v614
        %s617 = sld [smem:[#allocation2 + $0xf]]
        %v618 = vstv %s617
        %v619 = vmul.f32 %v618, %v281
        %v620 = vmul.f32 %v618, %v282
        %v621 = vadd.f32 %v615, %v619
        %v622 = vadd.f32 %v616, %v620
        %s623 = sld [smem:[#allocation2 + $0x40]]
        %v624 = vstv %s623
        %v625 = vmul.f32 %v624, %v291
        %v626 = vmul.f32 %v624, %v292
        %v627 = vadd.f32 %v621, %v625
        %v628 = vadd.f32 %v622, %v626
        %s629 = sld [smem:[#allocation2 + $0x10]]
        %v630 = vstv %s629
        %v631 = vmul.f32 %v630, %v308
        %v632 = vmul.f32 %v630, %v309
        %v633 = vadd.f32 %v627, %v631
        %v634 = vadd.f32 %v628, %v632
        %s635 = sld [smem:[#allocation2 + $0x41]]
        %v636 = vstv %s635
        %v637 = vmul.f32 %v636, %v318
        %v638 = vmul.f32 %v636, %v319
        %v639 = vadd.f32 %v633, %v637
        %v640 = vadd.f32 %v634, %v638
        %s641 = sld [smem:[#allocation2 + $0x11]]
        %v642 = vstv %s641
        %v643 = vmul.f32 %v642, %v326
        %v644 = vmul.f32 %v642, %v327
        %v645 = vadd.f32 %v639, %v643
        %v646 = vadd.f32 %v640, %v644
        %s647 = sld [smem:[#allocation2 + $0x42]]
        %v648 = vstv %s647
        %v649 = vmul.f32 %v648, %v328
        %v650 = vmul.f32 %v648, %v329
        %v651 = vadd.f32 %v645, %v649
        %v652 = vadd.f32 %v646, %v650
        %s653 = sld [smem:[#allocation2 + $0x12]]
        %v654 = vstv %s653
        %v655 = vmul.f32 %v654, %v345
        %v656 = vmul.f32 %v654, %v346
        %v657 = vadd.f32 %v651, %v655
        %v658 = vadd.f32 %v652, %v656
        %s659 = sld [smem:[#allocation2 + $0x43]]
        %v660 = vstv %s659
        %v661 = vmul.f32 %v660, %v355
        %v662 = vmul.f32 %v660, %v356
        %v663 = vadd.f32 %v657, %v661
        %v664 = vadd.f32 %v658, %v662
        %s665 = sld [smem:[#allocation2 + $0x13]]
        %v666 = vstv %s665
        %v667 = vmul.f32 %v666, %v372
        %v668 = vmul.f32 %v666, %v373
        %v669 = vadd.f32 %v663, %v667
        %v670 = vadd.f32 %v664, %v668
        %s671 = sld [smem:[#allocation2 + $0x44]]
        %v672 = vstv %s671
        %v673 = vmul.f32 %v672, %v382
        %v674 = vmul.f32 %v672, %v383
        %v675 = vadd.f32 %v669, %v673
        %v676 = vadd.f32 %v670, %v674
        %s677 = sld [smem:[#allocation2 + $0x14]]
        %v678 = vstv %s677
        %v679 = vmul.f32 %v678, %v399
        %v680 = vmul.f32 %v678, %v400
        %v681 = vadd.f32 %v675, %v679
        %v682 = vadd.f32 %v676, %v680
        %s683 = sld [smem:[#allocation2 + $0x45]]
        %v684 = vstv %s683
        %v685 = vmul.f32 %v684, %v409
        %v686 = vmul.f32 %v684, %v410
        %v687 = vadd.f32 %v681, %v685
        %v688 = vadd.f32 %v682, %v686
        %691 = vrot.lane.b32.xlu0 %v687, 16
        %v692 = vpop.permute.xlu0 %691
        %693 = vrot.lane.b32.xlu0 %v688, 16
        %v694 = vpop.permute.xlu0 %693
        %vm695 = vcmask 130048
        %v696 = vsel %vm695, %v692, %v694
        %v699 = vsel %vm695, 0.0, %v692
        %v700 = vadd.f32 %v603, %v699
        %v701 = vadd.f32 %v604, %v696
        %s702 = sld [smem:[#allocation2 + $0x15]]
        %v703 = vstv %s702
        %v704 = vmul.f32 %v703, %v252
        %v705 = vmul.f32 %v703, %v253
        %v706 = vadd.f32 %v704, 0.0
        %v707 = vadd.f32 %v705, 0.0
        %s708 = sld [smem:[#allocation2 + $0x46]]
        %v709 = vstv %s708
        %v710 = vmul.f32 %v709, %v264
        %v711 = vmul.f32 %v709, %v265
        %v712 = vadd.f32 %v706, %v710
        %v713 = vadd.f32 %v707, %v711
        %s714 = sld [smem:[#allocation2 + $0x16]]
        %v715 = vstv %s714
        %v716 = vmul.f32 %v715, %v281
        %v717 = vmul.f32 %v715, %v282
        %v718 = vadd.f32 %v712, %v716
        %v719 = vadd.f32 %v713, %v717
        %s720 = sld [smem:[#allocation2 + $0x47]]
        %v721 = vstv %s720
        %v722 = vmul.f32 %v721, %v291
        %v723 = vmul.f32 %v721, %v292
        %v724 = vadd.f32 %v718, %v722
        %v725 = vadd.f32 %v719, %v723
        %s726 = sld [smem:[#allocation2 + $0x17]]
        %v727 = vstv %s726
        %v728 = vmul.f32 %v727, %v308
        %v729 = vmul.f32 %v727, %v309
        %v730 = vadd.f32 %v724, %v728
        %v731 = vadd.f32 %v725, %v729
        %s732 = sld [smem:[#allocation2 + $0x48]]
        %v733 = vstv %s732
        %v734 = vmul.f32 %v733, %v318
        %v735 = vmul.f32 %v733, %v319
        %v736 = vadd.f32 %v730, %v734
        %v737 = vadd.f32 %v731, %v735
        %s738 = sld [smem:[#allocation2 + $0x18]]
        %v739 = vstv %s738
        %v740 = vmul.f32 %v739, %v326
        %v741 = vmul.f32 %v739, %v327
        %v742 = vadd.f32 %v736, %v740
        %v743 = vadd.f32 %v737, %v741
        %s744 = sld [smem:[#allocation2 + $0x49]]
        %v745 = vstv %s744
        %v746 = vmul.f32 %v745, %v328
        %v747 = vmul.f32 %v745, %v329
        %v748 = vadd.f32 %v742, %v746
        %v749 = vadd.f32 %v743, %v747
        %s750 = sld [smem:[#allocation2 + $0x19]]
        %v751 = vstv %s750
        %v752 = vmul.f32 %v751, %v345
        %v753 = vmul.f32 %v751, %v346
        %v754 = vadd.f32 %v748, %v752
        %v755 = vadd.f32 %v749, %v753
        %s756 = sld [smem:[#allocation2 + $0x4a]]
        %v757 = vstv %s756
        %v758 = vmul.f32 %v757, %v355
        %v759 = vmul.f32 %v757, %v356
        %v760 = vadd.f32 %v754, %v758
        %v761 = vadd.f32 %v755, %v759
        %s762 = sld [smem:[#allocation2 + $0x1a]]
        %v763 = vstv %s762
        %v764 = vmul.f32 %v763, %v372
        %v765 = vmul.f32 %v763, %v373
        %v766 = vadd.f32 %v760, %v764
        %v767 = vadd.f32 %v761, %v765
        %s768 = sld [smem:[#allocation2 + $0x4b]]
        %v769 = vstv %s768
        %v770 = vmul.f32 %v769, %v382
        %v771 = vmul.f32 %v769, %v383
        %v772 = vadd.f32 %v766, %v770
        %v773 = vadd.f32 %v767, %v771
        %s774 = sld [smem:[#allocation2 + $0x1b]]
        %v775 = vstv %s774
        %v776 = vmul.f32 %v775, %v399
        %v777 = vmul.f32 %v775, %v400
        %v778 = vadd.f32 %v772, %v776
        %v779 = vadd.f32 %v773, %v777
        %s780 = sld [smem:[#allocation2 + $0x4c]]
        %v781 = vstv %s780
        %v782 = vmul.f32 %v781, %v409
        %v783 = vmul.f32 %v781, %v410
        %v784 = vadd.f32 %v778, %v782
        %v785 = vadd.f32 %v779, %v783
        %v786 = vadd.f32 %v700, %v784
        %v787 = vadd.f32 %v701, %v785
        %s788 = sld [smem:[#allocation2 + $0x1c]]
        %v789 = vstv %s788
        %v790 = vmul.f32 %v789, %v252
        %v791 = vmul.f32 %v789, %v253
        %v792 = vadd.f32 %v790, 0.0
        %v793 = vadd.f32 %v791, 0.0
        %s794 = sld [smem:[#allocation2 + $0x4d]]
        %v795 = vstv %s794
        %v796 = vmul.f32 %v795, %v264
        %v797 = vmul.f32 %v795, %v265
        %v798 = vadd.f32 %v792, %v796
        %v799 = vadd.f32 %v793, %v797
        %s800 = sld [smem:[#allocation2 + $0x1d]]
        %v801 = vstv %s800
        %v802 = vmul.f32 %v801, %v281
        %v803 = vmul.f32 %v801, %v282
        %v804 = vadd.f32 %v798, %v802
        %v805 = vadd.f32 %v799, %v803
        %s806 = sld [smem:[#allocation2 + $0x4e]]
        %v807 = vstv %s806
        %v808 = vmul.f32 %v807, %v291
        %v809 = vmul.f32 %v807, %v292
        %v810 = vadd.f32 %v804, %v808
        %v811 = vadd.f32 %v805, %v809
        %s812 = sld [smem:[#allocation2 + $0x1e]]
        %v813 = vstv %s812
        %v814 = vmul.f32 %v813, %v308
        %v815 = vmul.f32 %v813, %v309
        %v816 = vadd.f32 %v810, %v814
        %v817 = vadd.f32 %v811, %v815
        %s818 = sld [smem:[#allocation2 + $0x4f]]
        %v819 = vstv %s818
        %v820 = vmul.f32 %v819, %v318
        %v821 = vmul.f32 %v819, %v319
        %v822 = vadd.f32 %v816, %v820
        %v823 = vadd.f32 %v817, %v821
        %s824 = sld [smem:[#allocation2 + $0x1f]]
        %v825 = vstv %s824
        %v826 = vmul.f32 %v825, %v326
        %v827 = vmul.f32 %v825, %v327
        %v828 = vadd.f32 %v822, %v826
        %v829 = vadd.f32 %v823, %v827
        %s830 = sld [smem:[#allocation2 + $0x50]]
        %v831 = vstv %s830
        %v832 = vmul.f32 %v831, %v328
        %v833 = vmul.f32 %v831, %v329
        %v834 = vadd.f32 %v828, %v832
        %v835 = vadd.f32 %v829, %v833
        %s836 = sld [smem:[#allocation2 + $0x20]]
        %v837 = vstv %s836
        %v838 = vmul.f32 %v837, %v345
        %v839 = vmul.f32 %v837, %v346
        %v840 = vadd.f32 %v834, %v838
        %v841 = vadd.f32 %v835, %v839
        %s842 = sld [smem:[#allocation2 + $0x51]]
        %v843 = vstv %s842
        %v844 = vmul.f32 %v843, %v355
        %v845 = vmul.f32 %v843, %v356
        %v846 = vadd.f32 %v840, %v844
        %v847 = vadd.f32 %v841, %v845
        %s848 = sld [smem:[#allocation2 + $0x21]]
        %v849 = vstv %s848
        %v850 = vmul.f32 %v849, %v372
        %v851 = vmul.f32 %v849, %v373
        %v852 = vadd.f32 %v846, %v850
        %v853 = vadd.f32 %v847, %v851
        %s854 = sld [smem:[#allocation2 + $0x52]]
        %v855 = vstv %s854
        %v856 = vmul.f32 %v855, %v382
        %v857 = vmul.f32 %v855, %v383
        %v858 = vadd.f32 %v852, %v856
        %v859 = vadd.f32 %v853, %v857
        %s860 = sld [smem:[#allocation2 + $0x22]]
        %v861 = vstv %s860
        %v862 = vmul.f32 %v861, %v399
        %v863 = vmul.f32 %v861, %v400
        %v864 = vadd.f32 %v858, %v862
        %v865 = vadd.f32 %v859, %v863
        %s866 = sld [smem:[#allocation2 + $0x53]]
        %v867 = vstv %s866
        %v868 = vmul.f32 %v867, %v409
        %v869 = vmul.f32 %v867, %v410
        %v870 = vadd.f32 %v864, %v868
        %v871 = vadd.f32 %v865, %v869
        %874 = vrot.lane.b32.xlu0 %v870, 112
        %v875 = vpop.permute.xlu0 %874
        %876 = vrot.lane.b32.xlu0 %v871, 112
        %v877 = vpop.permute.xlu0 %876
        %vm878 = vcmask 916480
        %v879 = vsel %vm878, %v875, %v877
        %v882 = vsel %vm878, %v877, 0.0
        %v883 = vadd.f32 %v786, %v879
        %v884 = vadd.f32 %v787, %v882
        %s885 = sld [smem:[#allocation2 + $0x23]]
        %v886 = vstv %s885
        %v887 = vmul.f32 %v886, %v252
        %v888 = vmul.f32 %v886, %v253
        %v889 = vadd.f32 %v887, 0.0
        %v890 = vadd.f32 %v888, 0.0
        %s891 = sld [smem:[#allocation2 + $0x54]]
        %v892 = vstv %s891
        %v893 = vmul.f32 %v892, %v264
        %v894 = vmul.f32 %v892, %v265
        %v895 = vadd.f32 %v889, %v893
        %v896 = vadd.f32 %v890, %v894
        %s897 = sld [smem:[#allocation2 + $0x24]]
        %v898 = vstv %s897
        %v899 = vmul.f32 %v898, %v281
        %v900 = vmul.f32 %v898, %v282
        %v901 = vadd.f32 %v895, %v899
        %v902 = vadd.f32 %v896, %v900
        %s903 = sld [smem:[#allocation2 + $0x55]]
        %v904 = vstv %s903
        %v905 = vmul.f32 %v904, %v291
        %v906 = vmul.f32 %v904, %v292
        %v907 = vadd.f32 %v901, %v905
        %v908 = vadd.f32 %v902, %v906
        %s909 = sld [smem:[#allocation2 + $0x25]]
        %v910 = vstv %s909
        %v911 = vmul.f32 %v910, %v308
        %v912 = vmul.f32 %v910, %v309
        %v913 = vadd.f32 %v907, %v911
        %v914 = vadd.f32 %v908, %v912
        %s915 = sld [smem:[#allocation2 + $0x56]]
        %v916 = vstv %s915
        %v917 = vmul.f32 %v916, %v318
        %v918 = vmul.f32 %v916, %v319
        %v919 = vadd.f32 %v913, %v917
        %v920 = vadd.f32 %v914, %v918
        %s921 = sld [smem:[#allocation2 + $0x26]]
        %v922 = vstv %s921
        %v923 = vmul.f32 %v922, %v326
        %v924 = vmul.f32 %v922, %v327
        %v925 = vadd.f32 %v919, %v923
        %v926 = vadd.f32 %v920, %v924
        %s927 = sld [smem:[#allocation2 + $0x57]]
        %v928 = vstv %s927
        %v929 = vmul.f32 %v928, %v328
        %v930 = vmul.f32 %v928, %v329
        %v931 = vadd.f32 %v925, %v929
        %v932 = vadd.f32 %v926, %v930
        %s933 = sld [smem:[#allocation2 + $0x27]]
        %v934 = vstv %s933
        %v935 = vmul.f32 %v934, %v345
        %v936 = vmul.f32 %v934, %v346
        %v937 = vadd.f32 %v931, %v935
        %v938 = vadd.f32 %v932, %v936
        %s939 = sld [smem:[#allocation2 + $0x58]]
        %v940 = vstv %s939
        %v941 = vmul.f32 %v940, %v355
        %v942 = vmul.f32 %v940, %v356
        %v943 = vadd.f32 %v937, %v941
        %v944 = vadd.f32 %v938, %v942
        %s945 = sld [smem:[#allocation2 + $0x28]]
        %v946 = vstv %s945
        %v947 = vmul.f32 %v946, %v372
        %v948 = vmul.f32 %v946, %v373
        %v949 = vadd.f32 %v943, %v947
        %v950 = vadd.f32 %v944, %v948
        %s951 = sld [smem:[#allocation2 + $0x59]]
        %v952 = vstv %s951
        %v953 = vmul.f32 %v952, %v382
        %v954 = vmul.f32 %v952, %v383
        %v955 = vadd.f32 %v949, %v953
        %v956 = vadd.f32 %v950, %v954
        %s957 = sld [smem:[#allocation2 + $0x29]]
        %v958 = vstv %s957
        %v959 = vmul.f32 %v958, %v399
        %v960 = vmul.f32 %v958, %v400
        %v961 = vadd.f32 %v955, %v959
        %v962 = vadd.f32 %v956, %v960
        %s963 = sld [smem:[#allocation2 + $0x5a]]
        %v964 = vstv %s963
        %v965 = vmul.f32 %v964, %v409
        %v966 = vmul.f32 %v964, %v410
        %v967 = vadd.f32 %v961, %v965
        %v968 = vadd.f32 %v962, %v966
        %971 = vrot.lane.b32.xlu0 %v967, 96
        %v972 = vpop.permute.xlu0 %971
        %973 = vrot.lane.b32.xlu0 %v968, 96
        %v974 = vpop.permute.xlu0 %973
        %vm975 = vcmask 785408
        %v976 = vsel %vm975, %v972, %v974
        %v979 = vsel %vm975, %v974, 0.0
        %v980 = vadd.f32 %v883, %v976
        %v981 = vadd.f32 %v884, %v979
        %s982 = sld [smem:[#allocation2 + $0x2a]]
        %v983 = vstv %s982
        %v984 = vmul.f32 %v983, %v252
        %v985 = vmul.f32 %v983, %v253
        %v986 = vadd.f32 %v984, 0.0
        %v987 = vadd.f32 %v985, 0.0
        %s988 = sld [smem:[#allocation2 + $0x5b]]
        %v989 = vstv %s988
        %v990 = vmul.f32 %v989, %v264
        %v991 = vmul.f32 %v989, %v265
        %v992 = vadd.f32 %v986, %v990
        %v993 = vadd.f32 %v987, %v991
        %s994 = sld [smem:[#allocation2 + $0x2b]]
        %v995 = vstv %s994
        %v996 = vmul.f32 %v995, %v281
        %v997 = vmul.f32 %v995, %v282
        %v998 = vadd.f32 %v992, %v996
        %v999 = vadd.f32 %v993, %v997
        %s1000 = sld [smem:[#allocation2 + $0x5c]]
        %v1001 = vstv %s1000
        %v1002 = vmul.f32 %v1001, %v291
        %v1003 = vmul.f32 %v1001, %v292
        %v1004 = vadd.f32 %v998, %v1002
        %v1005 = vadd.f32 %v999, %v1003
        %s1006 = sld [smem:[#allocation2 + $0x2c]]
        %v1007 = vstv %s1006
        %v1008 = vmul.f32 %v1007, %v308
        %v1009 = vmul.f32 %v1007, %v309
        %v1010 = vadd.f32 %v1004, %v1008
        %v1011 = vadd.f32 %v1005, %v1009
        %s1012 = sld [smem:[#allocation2 + $0x5d]]
        %v1013 = vstv %s1012
        %v1014 = vmul.f32 %v1013, %v318
        %v1015 = vmul.f32 %v1013, %v319
        %v1016 = vadd.f32 %v1010, %v1014
        %v1017 = vadd.f32 %v1011, %v1015
        %s1018 = sld [smem:[#allocation2 + $0x2d]]
        %v1019 = vstv %s1018
        %v1020 = vmul.f32 %v1019, %v326
        %v1021 = vmul.f32 %v1019, %v327
        %v1022 = vadd.f32 %v1016, %v1020
        %v1023 = vadd.f32 %v1017, %v1021
        %s1024 = sld [smem:[#allocation2 + $0x5e]]
        %v1025 = vstv %s1024
        %v1026 = vmul.f32 %v1025, %v328
        %v1027 = vmul.f32 %v1025, %v329
        %v1028 = vadd.f32 %v1022, %v1026
        %v1029 = vadd.f32 %v1023, %v1027
        %s1030 = sld [smem:[#allocation2 + $0x2e]]
        %v1031 = vstv %s1030
        %v1032 = vmul.f32 %v1031, %v345
        %v1033 = vmul.f32 %v1031, %v346
        %v1034 = vadd.f32 %v1028, %v1032
        %v1035 = vadd.f32 %v1029, %v1033
        %s1036 = sld [smem:[#allocation2 + $0x5f]]
        %v1037 = vstv %s1036
        %v1038 = vmul.f32 %v1037, %v355
        %v1039 = vmul.f32 %v1037, %v356
        %v1040 = vadd.f32 %v1034, %v1038
        %v1041 = vadd.f32 %v1035, %v1039
        %s1042 = sld [smem:[#allocation2 + $0x2f]]
        %v1043 = vstv %s1042
        %v1044 = vmul.f32 %v1043, %v372
        %v1045 = vmul.f32 %v1043, %v373
        %v1046 = vadd.f32 %v1040, %v1044
        %v1047 = vadd.f32 %v1041, %v1045
        %s1048 = sld [smem:[#allocation2 + $0x60]]
        %v1049 = vstv %s1048
        %v1050 = vmul.f32 %v1049, %v382
        %v1051 = vmul.f32 %v1049, %v383
        %v1052 = vadd.f32 %v1046, %v1050
        %v1053 = vadd.f32 %v1047, %v1051
        %s1054 = sld [smem:[#allocation2 + $0x30]]
        %v1055 = vstv %s1054
        %v1056 = vmul.f32 %v1055, %v399
        %v1057 = vmul.f32 %v1055, %v400
        %v1058 = vadd.f32 %v1052, %v1056
        %v1059 = vadd.f32 %v1053, %v1057
        %s1060 = sld [smem:[#allocation2 + $0x61]]
        %v1061 = vstv %s1060
        %v1062 = vmul.f32 %v1061, %v409
        %v1063 = vmul.f32 %v1061, %v410
        %v1064 = vadd.f32 %v1058, %v1062
        %v1065 = vadd.f32 %v1059, %v1063
        %1068 = vrot.lane.b32.xlu0 %v1064, 80
        %v1069 = vpop.permute.xlu0 %1068
        %1070 = vrot.lane.b32.xlu0 %v1065, 80
        %v1071 = vpop.permute.xlu0 %1070
        %vm1072 = vcmask 654336
        %v1073 = vsel %vm1072, %v1069, %v1071
        %v1076 = vsel %vm1072, %v1071, 0.0
        %v1077 = vadd.f32 %v980, %v1073
        %v1078 = vadd.f32 %v981, %v1076
        %v1079 = vmul.f32 %v1077, 0.5
        %v1080 = vmul.f32 %v1078, 0.5
        %v1081 = vtanh.pop %v1079
        %v1082 = vtanh.pop %v1080
        %v1083 = vadd.f32 %v1081, 1.0
        %v1084 = vadd.f32 %v1082, 1.0
        %v1085 = vmul.f32 %v1083, 0.5
        %v1086 = vmul.f32 %v1084, 0.5
        %v1087 = vlaneseq
        %v1088 = vshrl.u32 %v1087, 7
        %v1089 = vsub.s32 0, %v1088
        %v1090 = vrot.slane %v1085, %v1089
        %v1091 = vlaneseq
        %v1092 = vshrl.u32 %v1091, 7
        %v1093 = vsub.s32 0, %v1092
        %v1094 = vrot.slane %v1086, %v1093
        %v1097 = vcombine.low %v1090, %v1094
        %v1099 = vmul.f32 %v199, %v1097
        %1100 = vst [vmem:[%s171] sm:$0xff] %v1099
        %s1101 = sand.u32 %s75, 1
        %s1102 = scalar_lea.sflag [#allocation4], %s1101
        %s1103 = sand.u32 %s75, 1
        %s1104 = smul.addr %s1103, 8
        %s1105 = scalar_lea.vmem [#allocation7], %s1104
        // Predicated region
        $region37: #{tpu_custom_call.1} parent=27 // pred_check
          %p1106 = pneg %p85
        $region38: #{tpu_custom_call.1} parent=27 // pred_check_branch
          %1108 = sbr.rel (%p1106) target = $region40
        $region39: #{tpu_custom_call.1} parent=27 // pred_region
          %s1110 = ssub.s32 128, 128
          %1111 = vsyncadd %s1102, %s1110
          %s1112 = smul.addr %s20, 2
          %s1113 = smul.addr %s1112, 64
          %s1114 = scalar_lea.hbm %s2, %s1113
          %s1116 = sshll.u32 %s1105, 4
          %s1117 = int_to_ptr.vmem [resolvable:$true] %s1116
          %1119 = dma.vmem_to_hbm [thread:$0]  %s1117, 128, %s1114, %s1102
        $region40: #{tpu_custom_call.1} parent=27 // pred_fallthru
          _
      $region28: #{tpu_custom_call.1} parent=5 // pred_fallthru
        _
      %p1120 = scmp.le.s32.totalorder 2, %s15
      // Predicated region
      $region41: #{tpu_custom_call.1} parent=5 // pred_check
        %p1121 = pneg %p1120
      $region42: #{tpu_custom_call.1} parent=5 // pred_check_branch
        %1123 = sbr.rel (%p1121) target = $region44
      $region43: #{tpu_custom_call.1} parent=5 // pred_region
        %s1124 = ssub.s32 %s15, 2
        // Predicated region
        $region45: #{tpu_custom_call.1} parent=43 // pred_check
          %p1125 = pneg %p91
        $region46: #{tpu_custom_call.1} parent=43 // pred_check_branch
          %1127 = sbr.rel (%p1125) target = $region48
        $region47: #{tpu_custom_call.1} parent=43 // pred_region
          %s1128 = sand.u32 %s76, 1
          %s1129 = scalar_lea.sflag [#allocation4], %s1128
          %s1130 = sand.u32 %s76, 1
          %s1131 = smul.addr %s1130, 8
          %s1132 = scalar_lea.vmem [#allocation7], %s1131
          %1133 = dma.done %s1129, 128
        $region48: #{tpu_custom_call.1} parent=43 // pred_fallthru
          _
      $region44: #{tpu_custom_call.1} parent=5 // pred_fallthru
        _
    $region6: #{tpu_custom_call.1} parent=1 // loop_footer
      %s19 = sadd.s32 1, %s15
    $region7: #{tpu_custom_call.1} parent=1 // loop_footer_branch
      %14 = sbr.rel target = $region3
    $region8: #{tpu_custom_call.1} parent=1 // loop_exit
      _
    %1134 = vsyncpa [#allocation3], 1
    %s1135 = scalar_lea.sflag [#allocation3], 1
    %1136 = vsyncpa %s1135, 1
    %1137 = vsyncpa [#allocation4], 1
    %s1138 = scalar_lea.sflag [#allocation4], 1
    %1139 = vsyncpa %s1138, 1
    %1140 = vsyncpa [#allocation5], 1
    %s1141 = scalar_lea.sflag [#allocation5], 1
    %1142 = vsyncpa %s1141, 1

</llo_original>
